<compile_context>
chip_gen: v5e
topology: v5e:2x2
jax: 0.10.0
libtpu: 0.0.40
codegen_flags: <defaults>
</compile_context>

<pallas_src>
import functools

import jax
import jax.numpy as jnp
from jax.experimental import pallas as pl
from jax.experimental.pallas import tpu as pltpu

_KSUB = 128           # lanes per fused min/argmin sub-sweep
_INT_MAX = 2147483647


def _vq_encode_kernel(patches_ref, wproj_ref, bias_ref, cbT_ref, esq_ref,
                      idx_ref, z_sc, min_sc, arg_sc):
    """Fused patch-embed + K-streamed nearest-codebook search.

    Grid: (token tiles [parallel], K tiles [arbitrary, innermost]).

    patches_ref : (TN, CPPp) bf16  flattened (zero-padded) image patches
    wproj_ref   : (CPPp, D)  bf16  patch-embedding weight (conv, flattened)
    bias_ref    : (1, D)     f32   patch-embedding bias
    cbT_ref     : (D, KT)    bf16  codebook^T tile for this K step
    esq_ref     : (1, KT)    f32   ||e_k||^2 tile (+inf in padded slots)
    idx_ref     : (TN, 1)    i32   argmin index (written on the last K step)
    z_sc        : (TN, D)    bf16  patch embedding, computed once per token tile
    min_sc      : (TN, 1)    f32   running min squared-distance (sans ||z||^2)
    arg_sc      : (TN, 1)    i32   running argmin index
    """
    k_step = pl.program_id(1)
    k_tile = cbT_ref.shape[-1]

    @pl.when(k_step == 0)
    def _():
        # encoder: patch embedding (conv-as-matmul, bf16 in / f32 accumulate)
        z = jnp.dot(patches_ref[...], wproj_ref[...],
                    preferred_element_type=jnp.float32)
        z_sc[...] = (z + bias_ref[...]).astype(jnp.bfloat16)
        min_sc[...] = jnp.full(min_sc.shape, jnp.inf, dtype=min_sc.dtype)
        arg_sc[...] = jnp.zeros(arg_sc.shape, dtype=arg_sc.dtype)

    # ||z||^2 is constant w.r.t. k -> dropped from the argmin.
    z = z_sc[...]
    run_min = min_sc[...]
    run_arg = arg_sc[...]
    k_base = k_step * k_tile

    # Single streamed pass over 128-lane sub-blocks: matmul a sub-block of
    # scores, fold it into the running (min, argmin) and move on.  No full
    # (TN, k_tile) scores tile is ever kept live.
    for j in range(k_tile // _KSUB):
        sl = slice(j * _KSUB, (j + 1) * _KSUB)
        scores = esq_ref[:, sl] - 2.0 * jnp.dot(
            z, cbT_ref[:, sl], preferred_element_type=jnp.float32)
        blk_min = jnp.min(scores, axis=-1, keepdims=True)              # (TN, 1)
        lane = jax.lax.broadcasted_iota(jnp.int32, scores.shape, 1)
        blk_arg = jnp.min(jnp.where(scores <= blk_min, lane, _INT_MAX),
                          axis=-1, keepdims=True) + (k_base + j * _KSUB)
        # strict '<' keeps the earliest index on ties (torch.argmin behaviour)
        better = blk_min < run_min
        run_min = jnp.where(better, blk_min, run_min)
        run_arg = jnp.where(better, blk_arg, run_arg)

    min_sc[...] = run_min
    arg_sc[...] = run_arg

    @pl.when(k_step == pl.num_programs(1) - 1)
    def _():
        idx_ref[...] = arg_sc[...]


def vq_tower_forward(images, w_patch, b_patch, codebook, *, patch_size,
                     token_tile=256, k_tile=256):
    """VQTower.forward for a batched NCHW image tensor.

    Returns (image_features, indices):
      image_features : (B, H'*W', D), dtype == images.dtype
      indices        : (B, H'*W'),    int32   (== info[-1] in the torch code)
    """
    B, C, H, W = images.shape
    P = patch_size
    Hp, Wp = H // P, W // P
    T = Hp * Wp
    N = B * T
    K, D = codebook.shape
    CPP = C * P * P

    assert k_tile % _KSUB == 0

    # Shrink the token tile for small inputs so the leading "parallel" grid
    # axis still has >= 4 steps (>= 2 per v7x TensorCore).
    while token_tile > 128 and pl.cdiv(N, token_tile) < 4:
        token_tile //= 2

    # Padded sizes: tokens to a multiple of token_tile, contraction to a
    # multiple of 256 (clean MXU depth), codebook to a multiple of k_tile.
    Np = pl.cdiv(N, token_tile) * token_tile
    CPPp = pl.cdiv(CPP, 256) * 256
    Kp = pl.cdiv(K, k_tile) * k_tile

    # glue: patchify NCHW -> (N, C*P*P), row-major over (h', w') so the token
    # order matches rearrange('b c h w -> b (h w) c').  Cast to bf16 *before*
    # the transpose so the only materialized copy of the patch stream is bf16;
    # pad (one combined pass) only if actually required.
    patches = images.astype(jnp.bfloat16)
    patches = patches.reshape(B, C, Hp, P, Wp, P)
    patches = patches.transpose(0, 2, 4, 1, 3, 5).reshape(N, CPP)
    if Np != N or CPPp != CPP:
        patches = jnp.pad(patches, ((0, Np - N), (0, CPPp - CPP)))

    w = w_patch.astype(jnp.bfloat16)
    if CPPp != CPP:
        w = jnp.pad(w, ((0, CPPp - CPP), (0, 0)))
    bias = b_patch.reshape(1, D).astype(jnp.float32)

    # Hoisted codebook constants.  cbT is the bf16 MXU operand; ||e||^2 stays
    # f32 and padded codebook slots get +inf so they can never win the argmin.
    cb_f32 = codebook.astype(jnp.float32)
    cbT = codebook.astype(jnp.bfloat16).T                     # (D, K)  bf16
    esq = jnp.sum(cb_f32 * cb_f32, axis=-1).reshape(1, K)     # (1, K)  f32
    if Kp != K:
        cbT = jnp.pad(cbT, ((0, 0), (0, Kp - K)))
        esq = jnp.pad(esq, ((0, 0), (0, Kp - K)), constant_values=jnp.inf)

    grid = (Np // token_tile, Kp // k_tile)

    # Explicit VMEM budget (scoped defaults: 16 MiB v5e / 32 MiB v6e, v7x).
    est = (2 * token_tile * CPPp * 2      # patches tiles (double-buffered bf16)
           + 2 * CPPp * D * 2             # patch-embed weight
           + 2 * 8 * D * 4                # bias (sublane padded)
           + 2 * D * k_tile * 2           # codebook^T K tiles (double-buffered)
           + 2 * 8 * k_tile * 4           # ||e||^2 K tiles
           + 2 * token_tile * 128 * 4     # idx output block (lane padded)
           + token_tile * D * 2           # z scratch
           + 2 * token_tile * 128 * 4     # running min / argmin scratch
           + 4 * token_tile * _KSUB * 4)  # live scores sub-block + headroom
    vmem_limit = int(max(32 << 20, min(64 << 20, 2 * est + (8 << 20))))

    idx = pl.pallas_call(
        _vq_encode_kernel,
        out_shape=jax.ShapeDtypeStruct((Np, 1), jnp.int32),
        grid_spec=pltpu.PrefetchScalarGridSpec(
            num_scalar_prefetch=0,
            grid=grid,
            in_specs=[
                pl.BlockSpec((token_tile, CPPp), lambda i, k: (i, 0)),  # patches
                pl.BlockSpec((CPPp, D), lambda i, k: (0, 0)),           # w
                pl.BlockSpec((1, D), lambda i, k: (0, 0)),              # bias
                pl.BlockSpec((D, k_tile), lambda i, k: (0, k)),         # cb^T tile
                pl.BlockSpec((1, k_tile), lambda i, k: (0, k)),         # ||e||^2
            ],
            out_specs=pl.BlockSpec((token_tile, 1), lambda i, k: (i, 0)),
            scratch_shapes=[
                pltpu.VMEM((token_tile, D), jnp.bfloat16),   # z (patch embed)
                pltpu.VMEM((token_tile, 1), jnp.float32),    # running min
                pltpu.VMEM((token_tile, 1), jnp.int32),      # running argmin
            ]),
        compiler_params=pltpu.CompilerParams(
            dimension_semantics=("parallel", "arbitrary"),
            vmem_limit_bytes=vmem_limit),
    )(patches, w, bias, cbT, esq)

    inds = idx[:N, 0]
    # Codebook-row gather outside the kernel (tiny XLA gather) keeps quantized
    # features bit-exact codebook rows and frees MXU cycles in the kernel.
    feats = jnp.take(codebook, inds, axis=0).reshape(B, T, D).astype(images.dtype)
    return feats, inds.reshape(B, T)


def _reference_mirror(images, w_patch, b_patch, codebook, patch_size):
    """Pure-JAX reference mirroring the kernel's precision choices exactly."""
    B, C, H, W = images.shape
    P = patch_size
    Hp, Wp = H // P, W // P
    patches = images.astype(jnp.bfloat16).reshape(B, C, Hp, P, Wp, P)
    patches = patches.transpose(0, 2, 4, 1, 3, 5).reshape(B * Hp * Wp, C * P * P)
    z = jnp.dot(patches, w_patch.astype(jnp.bfloat16),
                preferred_element_type=jnp.float32) + b_patch
    zb = z.astype(jnp.bfloat16)
    cb32 = codebook.astype(jnp.float32)
    scores = (jnp.sum(cb32 * cb32, axis=-1)[None, :]
              - 2.0 * jnp.dot(zb, codebook.astype(jnp.bfloat16).T,
                              preferred_element_type=jnp.float32))
    return jnp.argmin(scores, axis=-1).astype(jnp.int32)


def _reference_f32(images, w_patch, b_patch, codebook, patch_size):
    """Full-precision squared distances d(z, e_k) for tolerance checking."""
    B, C, H, W = images.shape
    P = patch_size
    Hp, Wp = H // P, W // P
    patches = images.reshape(B, C, Hp, P, Wp, P)
    patches = patches.transpose(0, 2, 4, 1, 3, 5).reshape(B * Hp * Wp, C * P * P)
    z = patches.astype(jnp.float32) @ w_patch.astype(jnp.float32) + b_patch
    cb = codebook.astype(jnp.float32)
    d = (jnp.sum(z * z, -1, keepdims=True) - 2.0 * z @ cb.T
         + jnp.sum(cb * cb, -1)[None, :])
    return d


if __name__ == "__main__":
    # small synthetic config consistent with the module's structure
    B, C, H, W = 2, 3, 128, 128      # images NCHW
    P = 8                            # patch / compression factor -> 16x16 grid
    D = 128                          # embed_dim (feature channels)
    K = 512                          # codebook size (n_embed) -> 2 K tiles

    key = jax.random.PRNGKey(0)
    k_img, k_w, k_b, k_cb = jax.random.split(key, 4)

    images = jax.random.normal(k_img, (B, C, H, W), dtype=jnp.float32)
    # Conv2d(C, D, kernel=P, stride=P) weight has shape (D, C, P, P);
    # flatten to (C*P*P, D) so the patch order (c, ph, pw) matches.
    conv_w = jax.random.normal(k_w, (D, C, P, P), dtype=jnp.float32) * 0.02
    w_patch = conv_w.reshape(D, C * P * P).T
    b_patch = jax.random.normal(k_b, (1, D), dtype=jnp.float32) * 0.02
    codebook = jax.random.normal(k_cb, (K, D), dtype=jnp.float32)

    fwd = jax.jit(functools.partial(vq_tower_forward, patch_size=P))
    feats, inds = fwd(images, w_patch, b_patch, codebook)
    jax.block_until_ready(feats)
    jax.block_until_ready(inds)

    T = (H // P) * (W // P)
    assert feats.shape == (B, T, D)
    assert feats.dtype == images.dtype
    assert inds.shape == (B, T)
    assert inds.dtype == jnp.int32

    inds_flat = inds.reshape(-1)

    # 1) indices match a reference mirroring the kernel's precision choices
    ref_idx = _reference_mirror(images, w_patch, b_patch, codebook, P)
    match = float(jnp.mean((inds_flat == ref_idx).astype(jnp.float32)))
    assert match >= 0.98, f"index match fraction too low: {match}"

    # 2) selected entries are (near-)optimal under full f32 distances: any
    #    divergence from the f32 argmin must be a genuine bf16 near-tie.
    d = _reference_f32(images, w_patch, b_patch, codebook, P)
    d_min = jnp.min(d, axis=-1)
    d_sel = jnp.take_along_axis(d, inds_flat[:, None], axis=-1)[:, 0]
    assert bool(jnp.all(d_sel <= d_min + 0.5 + 1e-3 * jnp.abs(d_min))), \
        "selected codebook entries are not near-optimal"

    # 3) quantized features are exact codebook rows for the emitted indices
    assert bool(jnp.all(feats.reshape(-1, D) ==
                        codebook[inds_flat].astype(images.dtype)))

    print("KERNEL_OK")
</pallas_src>

<mosaic_0001>
module attributes {stable_mosaic.version = 11 : i64} {
  func.func @_vq_encode_kernel(%arg0: i32, %arg1: i32, %arg2: memref<128x256xbf16, #tpu.memory_space<vmem>>, %arg3: memref<256x128xbf16, #tpu.memory_space<vmem>>, %arg4: memref<1x128xf32, #tpu.memory_space<vmem>>, %arg5: memref<128x256xbf16, #tpu.memory_space<vmem>>, %arg6: memref<1x256xf32, #tpu.memory_space<vmem>>, %arg7: memref<128x1xi32, #tpu.memory_space<vmem>>, %arg8: memref<128x128xbf16, #tpu.memory_space<vmem>>, %arg9: memref<128x1xf32, #tpu.memory_space<vmem>>, %arg10: memref<128x1xi32, #tpu.memory_space<vmem>>) attributes {dimension_semantics = [#tpu.dimension_semantics<parallel>, #tpu.dimension_semantics<arbitrary>], iteration_bounds = array<i64: 4, 2>, scalar_prefetch = 0 : i64, scratch_operands = 3 : i64, tpu.core_type = #tpu.core_type<tc>, window_params = [{transform_indices = @transform_0, window_bounds = array<i64: 128, 256>}, {pipeline_mode = #tpu.pipeline_mode<synchronous>, transform_indices = @transform_1, window_bounds = array<i64: 256, 128>}, {pipeline_mode = #tpu.pipeline_mode<synchronous>, transform_indices = @transform_2, window_bounds = array<i64: 1, 128>}, {transform_indices = @transform_3, window_bounds = array<i64: 128, 256>}, {transform_indices = @transform_4, window_bounds = array<i64: 1, 256>}, {transform_indices = @transform_5, window_bounds = array<i64: 128, 1>}]} {
    %c0_i32 = arith.constant 0 : i32
    %0 = arith.cmpi eq, %arg1, %c0_i32 : i32
    %1 = arith.extui %0 : i1 to i32
    %c0_i32_0 = arith.constant 0 : i32
    %2 = arith.cmpi ne, %1, %c0_i32_0 : i32
    scf.if %2 {
      %c0_27 = arith.constant 0 : index
      %c0_28 = arith.constant 0 : index
      %56 = vector.load %arg2[%c0_27, %c0_28] : memref<128x256xbf16, #tpu.memory_space<vmem>>, vector<128x256xbf16>
      %c0_29 = arith.constant 0 : index
      %c0_30 = arith.constant 0 : index
      %57 = vector.load %arg3[%c0_29, %c0_30] : memref<256x128xbf16, #tpu.memory_space<vmem>>, vector<256x128xbf16>
      %cst_31 = arith.constant dense<0.000000e+00> : vector<128x128xf32>
      %58 = tpu.matmul %56, %57, %cst_31 {dimension_numbers = #tpu.dot_dimension_numbers<[1], [0], [0], [1], [0, 0, 1, 1], [], []>} : vector<128x256xbf16>, vector<256x128xbf16>, vector<128x128xf32> -> vector<128x128xf32>
      %c0_32 = arith.constant 0 : index
      %c0_33 = arith.constant 0 : index
      %59 = vector.load %arg4[%c0_32, %c0_33] : memref<1x128xf32, #tpu.memory_space<vmem>>, vector<1x128xf32>
      %60 = vector.broadcast %59 : vector<1x128xf32> to vector<128x128xf32>
      %61 = arith.addf %58, %60 : vector<128x128xf32>
      %62 = arith.truncf %61 : vector<128x128xf32> to vector<128x128xbf16>
      %c0_34 = arith.constant 0 : index
      %c0_35 = arith.constant 0 : index
      %63 = vector.load %arg8[%c0_34, %c0_35] : memref<128x128xbf16, #tpu.memory_space<vmem>>, vector<128x128xbf16>
      tpu.vector_store %arg8[%c0_34, %c0_35], %62 {strides = array<i32>} : memref<128x128xbf16, #tpu.memory_space<vmem>>, vector<128x128xbf16>,
      %cst_36 = arith.constant 0x7F800000 : f32
      %64 = vector.broadcast %cst_36 : f32 to vector<128x1xf32>
      %c0_37 = arith.constant 0 : index
      %c0_38 = arith.constant 0 : index
      %65 = vector.load %arg9[%c0_37, %c0_38] : memref<128x1xf32, #tpu.memory_space<vmem>>, vector<128x1xf32>
      tpu.vector_store %arg9[%c0_37, %c0_38], %64 {strides = array<i32>} : memref<128x1xf32, #tpu.memory_space<vmem>>, vector<128x1xf32>,
      %c0_i32_39 = arith.constant 0 : i32
      %66 = vector.broadcast %c0_i32_39 : i32 to vector<128x1xi32>
      %c0_40 = arith.constant 0 : index
      %c0_41 = arith.constant 0 : index
      %67 = vector.load %arg10[%c0_40, %c0_41] : memref<128x1xi32, #tpu.memory_space<vmem>>, vector<128x1xi32>
      tpu.vector_store %arg10[%c0_40, %c0_41], %66 {strides = array<i32>} : memref<128x1xi32, #tpu.memory_space<vmem>>, vector<128x1xi32>,
    } else {
    }
    %c0 = arith.constant 0 : index
    %c0_1 = arith.constant 0 : index
    %3 = vector.load %arg8[%c0, %c0_1] : memref<128x128xbf16, #tpu.memory_space<vmem>>, vector<128x128xbf16>
    %c0_2 = arith.constant 0 : index
    %c0_3 = arith.constant 0 : index
    %4 = vector.load %arg9[%c0_2, %c0_3] : memref<128x1xf32, #tpu.memory_space<vmem>>, vector<128x1xf32>
    %c0_4 = arith.constant 0 : index
    %c0_5 = arith.constant 0 : index
    %5 = vector.load %arg10[%c0_4, %c0_5] : memref<128x1xi32, #tpu.memory_space<vmem>>, vector<128x1xi32>
    %c256_i32 = arith.constant 256 : i32
    %6 = arith.muli %arg1, %c256_i32 : i32
    %c0_6 = arith.constant 0 : index
    %c0_7 = arith.constant 0 : index
    %7 = vector.load %arg6[%c0_6, %c0_7] : memref<1x256xf32, #tpu.memory_space<vmem>>, vector<1x128xf32>
    %c0_8 = arith.constant 0 : index
    %c0_9 = arith.constant 0 : index
    %8 = vector.load %arg5[%c0_8, %c0_9] : memref<128x256xbf16, #tpu.memory_space<vmem>>, vector<128x128xbf16>
    %cst = arith.constant dense<0.000000e+00> : vector<128x128xf32>
    %9 = tpu.matmul %3, %8, %cst {dimension_numbers = #tpu.dot_dimension_numbers<[1], [0], [0], [1], [0, 0, 1, 1], [], []>} : vector<128x128xbf16>, vector<128x128xbf16>, vector<128x128xf32> -> vector<128x128xf32>
    %cst_10 = arith.constant 2.000000e+00 : f32
    %10 = vector.broadcast %cst_10 : f32 to vector<128x128xf32>
    %11 = arith.mulf %10, %9 : vector<128x128xf32>
    %12 = vector.broadcast %7 : vector<1x128xf32> to vector<128x128xf32>
    %13 = arith.subf %12, %11 : vector<128x128xf32>
    %cst_11 = arith.constant dense<0x7F800000> : vector<128xf32>
    %14 = vector.multi_reduction <minimumf>, %13, %cst_11 [1] : vector<128x128xf32> to vector<128xf32>
    %15 = vector.shape_cast %14 : vector<128xf32> to vector<128x1xf32>
    %16 = tpu.iota {dimensions = array<i32: 1>} : vector<128x128xi32>
    %17 = vector.broadcast %15 : vector<128x1xf32> to vector<128x128xf32>
    %18 = arith.cmpf ole, %13, %17 : vector<128x128xf32>
    %c2147483647_i32 = arith.constant 2147483647 : i32
    %19 = vector.broadcast %c2147483647_i32 : i32 to vector<128x128xi32>
    %20 = arith.select %18, %16, %19 : vector<128x128xi1>, vector<128x128xi32>
    %cst_12 = arith.constant dense<2147483647> : vector<128xi32>
    %21 = vector.multi_reduction <minsi>, %20, %cst_12 [1] : vector<128x128xi32> to vector<128xi32>
    %22 = vector.shape_cast %21 : vector<128xi32> to vector<128x1xi32>
    %c0_i32_13 = arith.constant 0 : i32
    %23 = arith.addi %6, %c0_i32_13 : i32
    %24 = vector.broadcast %23 : i32 to vector<128x1xi32>
    %25 = arith.addi %22, %24 : vector<128x1xi32>
    %26 = arith.cmpf olt, %15, %4 : vector<128x1xf32>
    %27 = arith.select %26, %15, %4 : vector<128x1xi1>, vector<128x1xf32>
    %28 = arith.select %26, %25, %5 : vector<128x1xi1>, vector<128x1xi32>
    %c0_14 = arith.constant 0 : index
    %c128 = arith.constant 128 : index
    %29 = vector.load %arg6[%c0_14, %c128] : memref<1x256xf32, #tpu.memory_space<vmem>>, vector<1x128xf32>
    %c0_15 = arith.constant 0 : index
    %c128_16 = arith.constant 128 : index
    %30 = vector.load %arg5[%c0_15, %c128_16] : memref<128x256xbf16, #tpu.memory_space<vmem>>, vector<128x128xbf16>
    %cst_17 = arith.constant dense<0.000000e+00> : vector<128x128xf32>
    %31 = tpu.matmul %3, %30, %cst_17 {dimension_numbers = #tpu.dot_dimension_numbers<[1], [0], [0], [1], [0, 0, 1, 1], [], []>} : vector<128x128xbf16>, vector<128x128xbf16>, vector<128x128xf32> -> vector<128x128xf32>
    %cst_18 = arith.constant 2.000000e+00 : f32
    %32 = vector.broadcast %cst_18 : f32 to vector<128x128xf32>
    %33 = arith.mulf %32, %31 : vector<128x128xf32>
    %34 = vector.broadcast %29 : vector<1x128xf32> to vector<128x128xf32>
    %35 = arith.subf %34, %33 : vector<128x128xf32>
    %cst_19 = arith.constant dense<0x7F800000> : vector<128xf32>
    %36 = vector.multi_reduction <minimumf>, %35, %cst_19 [1] : vector<128x128xf32> to vector<128xf32>
    %37 = vector.shape_cast %36 : vector<128xf32> to vector<128x1xf32>
    %38 = tpu.iota {dimensions = array<i32: 1>} : vector<128x128xi32>
    %39 = vector.broadcast %37 : vector<128x1xf32> to vector<128x128xf32>
    %40 = arith.cmpf ole, %35, %39 : vector<128x128xf32>
    %c2147483647_i32_20 = arith.constant 2147483647 : i32
    %41 = vector.broadcast %c2147483647_i32_20 : i32 to vector<128x128xi32>
    %42 = arith.select %40, %38, %41 : vector<128x128xi1>, vector<128x128xi32>
    %cst_21 = arith.constant dense<2147483647> : vector<128xi32>
    %43 = vector.multi_reduction <minsi>, %42, %cst_21 [1] : vector<128x128xi32> to vector<128xi32>
    %44 = vector.shape_cast %43 : vector<128xi32> to vector<128x1xi32>
    %c128_i32 = arith.constant 128 : i32
    %45 = arith.addi %6, %c128_i32 : i32
    %46 = vector.broadcast %45 : i32 to vector<128x1xi32>
    %47 = arith.addi %44, %46 : vector<128x1xi32>
    %48 = arith.cmpf olt, %37, %27 : vector<128x1xf32>
    %49 = arith.select %48, %37, %27 : vector<128x1xi1>, vector<128x1xf32>
    %50 = arith.select %48, %47, %28 : vector<128x1xi1>, vector<128x1xi32>
    %c0_22 = arith.constant 0 : index
    %c0_23 = arith.constant 0 : index
    %51 = vector.load %arg9[%c0_22, %c0_23] : memref<128x1xf32, #tpu.memory_space<vmem>>, vector<128x1xf32>
    tpu.vector_store %arg9[%c0_22, %c0_23], %49 {strides = array<i32>} : memref<128x1xf32, #tpu.memory_space<vmem>>, vector<128x1xf32>,
    %c0_24 = arith.constant 0 : index
    %c0_25 = arith.constant 0 : index
    %52 = vector.load %arg10[%c0_24, %c0_25] : memref<128x1xi32, #tpu.memory_space<vmem>>, vector<128x1xi32>
    tpu.vector_store %arg10[%c0_24, %c0_25], %50 {strides = array<i32>} : memref<128x1xi32, #tpu.memory_space<vmem>>, vector<128x1xi32>,
    %c1_i32 = arith.constant 1 : i32
    %53 = arith.cmpi eq, %arg1, %c1_i32 : i32
    %54 = arith.extui %53 : i1 to i32
    %c0_i32_26 = arith.constant 0 : i32
    %55 = arith.cmpi ne, %54, %c0_i32_26 : i32
    scf.if %55 {
      %c0_27 = arith.constant 0 : index
      %c0_28 = arith.constant 0 : index
      %56 = vector.load %arg10[%c0_27, %c0_28] : memref<128x1xi32, #tpu.memory_space<vmem>>, vector<128x1xi32>
      %c0_29 = arith.constant 0 : index
      %c0_30 = arith.constant 0 : index
      %57 = vector.load %arg7[%c0_29, %c0_30] : memref<128x1xi32, #tpu.memory_space<vmem>>, vector<128x1xi32>
      tpu.vector_store %arg7[%c0_29, %c0_30], %56 {strides = array<i32>} : memref<128x1xi32, #tpu.memory_space<vmem>>, vector<128x1xi32>,
    } else {
    }
    return
  }
  func.func @transform_0(%arg0: i32, %arg1: i32) -> (i32, i32) {
    %c0_i32 = arith.constant 0 : i32
    %c0_i32_0 = arith.constant 0 : i32
    return %arg0, %c0_i32 : i32, i32
  }
  func.func @transform_1(%arg0: i32, %arg1: i32) -> (i32, i32) {
    %c0_i32 = arith.constant 0 : i32
    %c0_i32_0 = arith.constant 0 : i32
    %c0_i32_1 = arith.constant 0 : i32
    return %c0_i32, %c0_i32_0 : i32, i32
  }
  func.func @transform_2(%arg0: i32, %arg1: i32) -> (i32, i32) {
    %c0_i32 = arith.constant 0 : i32
    %c0_i32_0 = arith.constant 0 : i32
    %c0_i32_1 = arith.constant 0 : i32
    return %c0_i32, %c0_i32_0 : i32, i32
  }
  func.func @transform_3(%arg0: i32, %arg1: i32) -> (i32, i32) {
    %c0_i32 = arith.constant 0 : i32
    %c0_i32_0 = arith.constant 0 : i32
    return %c0_i32, %arg1 : i32, i32
  }
  func.func @transform_4(%arg0: i32, %arg1: i32) -> (i32, i32) {
    %c0_i32 = arith.constant 0 : i32
    %c0_i32_0 = arith.constant 0 : i32
    return %c0_i32, %arg1 : i32, i32
  }
  func.func @transform_5(%arg0: i32, %arg1: i32) -> (i32, i32) {
    %c0_i32 = arith.constant 0 : i32
    %c0_i32_0 = arith.constant 0 : i32
    return %arg0, %c0_i32 : i32, i32
  }
}

</mosaic_0001>

<llo_original>
// kernel: vq_tower_forward.1
$region0: #{vq_tower_forward.1}
  #allocation0 [shape = 'u32[]', space=smem, size = 0x4, offset = 0x4, fixed_abs, tag = 'smem constant byte address 0x4 - core index']
  #allocation1 [shape = 'u32[72,128]{1,0:T(1,128)}', space=vmem, size = 0x9000, scoped, tag = 'internal scratch']
  #allocation2 [shape = 'bf16[128,128]{1,0:T(8,128)(2,1)}', space=vmem, size = 0x8000, scoped, tag = 'scratch operand']
  #allocation3 [shape = 'f32[128,1]{1,0:T(8,128)}', space=vmem, size = 0x10000, scoped, tag = 'scratch operand']
  #allocation4 [shape = 's32[128,1]{1,0:T(8,128)}', space=vmem, size = 0x10000, scoped, tag = 'scratch operand']
  %s0 = inlined_call_operand.vmem [shape: bf16[512,256], index: 0, kind: input, shape index: {}]
  %s1 = inlined_call_operand.vmem [shape: bf16[256,128], index: 1, kind: input, shape index: {}]
  %s2 = inlined_call_operand.vmem [shape: f32[1,128], index: 2, kind: input, shape index: {}]
  %s3 = inlined_call_operand.vmem [shape: bf16[128,512], index: 3, kind: input, shape index: {}]
  %s4 = inlined_call_operand.vmem [shape: f32[1,512], index: 4, kind: input, shape index: {}]
  %s5 = inlined_call_operand.vmem [shape: s32[512,1], index: 5, kind: output, shape index: {}]
  %s6 = sld [smem:[#allocation0]]
  $region99: #{vq_tower_forward.1} parent=0
    _
  %s8 = ssub.s32 1, %s6
  %s9 = scalar_select 0, %s8, %s6
  $region1: #{vq_tower_forward.1} parent=0
    #allocation5 [shape = 'u8[131072]{0}', space=vmem, size = 0x20000, scoped, tag = 'input window, operand 3']
    loop: start=0, step=1, limit=10
    $region2: #{vq_tower_forward.1} parent=1 // loop_pre_header
      _
    $region3: #{vq_tower_forward.1} parent=1 // loop_header
      %s11 = sphi 0, %s15
      %p12 = scmp.ge.s32.totalorder %s11, 10
      %s18 = sphi 0, %s30
      %s19 = sphi 0, %s26
      %s20 = sphi 0, %s18
      %s21 = sphi 0, %s19
      %s22 = sphi 0, %s20
      %s23 = sphi 0, %s21
      %s33 = sphi 0, %s35
      %s36 = sphi 0, %s33
      %s37 = sphi 0, %s36
      %s53 = sphi 0, %s37
      %s57 = sphi 0, %s57
      %s59 = sphi 0, %s57
      %s60 = sphi 0, %s59
      %s74 = sphi 0, %s60
      %s78 = sphi 0, %s78
      %s80 = sphi 0, %s78
      %s81 = sphi 0, %s80
      %s95 = sphi 0, %s81
      %s101 = sphi 0, %s103
      %s104 = sphi 0, %s101
      %s105 = sphi 0, %s104
      %s121 = sphi 0, %s105
      %s127 = sphi 0, %s129
      %s130 = sphi 0, %s127
      %s131 = sphi 0, %s130
      %s147 = sphi 0, %s131
      %s153 = sphi 0, %s155
      %s156 = sphi 0, %s153
      %s157 = sphi 0, %s156
      %s173 = sphi 0, %s157
    $region4: #{vq_tower_forward.1} parent=1 // loop_header_branch
      %14 = sbr.rel (%p12) target = $region8
    $region5: #{vq_tower_forward.1} parent=1 // loop_body
      %s16 = ssub.s32 %s11, 1
      %s17 = ssub.s32 %s11, 2
      %s24 = sadd.s32 1, %s19
      %p25 = scmp.ge.s32.totalorder %s24, 2
      %s26 = scalar_select %p25, 0, %s24
      %s27 = sadd.s32 1, %s18
      %s28 = scalar_select %p25, %s27, %s18
      %p29 = scmp.ge.s32.totalorder %s28, 4
      %s30 = scalar_select %p29, 0, %s28
      %s31 = ssub.s32 %s18, %s30
      %p32 = scmp.eq.s32.totalorder %s31, 0
      %s34 = sadd.s32 %s33, 1
      %s35 = scalar_select %p32, %s33, %s34
      %p38 = pneg %p32
      %p39 = scmp.eq.s32.totalorder %s11, 7
      %p40 = por %p38, %p39
      %p41 = scmp.ne.s32.totalorder %s33, %s36
      %p42 = scmp.eq.s32.totalorder %s11, 0
      %p43 = por %p41, %p42
      %p44 = scmp.ne.s32.totalorder %s33, %s36
      %p45 = scmp.eq.s32.totalorder %s16, 7
      %p46 = por %p44, %p45
      %p47 = scmp.ne.s32.totalorder %s36, %s37
      %p48 = scmp.eq.s32.totalorder %s16, 0
      %p49 = por %p47, %p48
      %p50 = scmp.ne.s32.totalorder %s36, %s37
      %p51 = scmp.eq.s32.totalorder %s17, 7
      %p52 = por %p50, %p51
      %p54 = scmp.ne.s32.totalorder %s37, %s53
      %p55 = scmp.eq.s32.totalorder %s17, 0
      %p56 = por %p54, %p55
      %s58 = sadd.s32 %s57, 1
      %p61 = scmp.eq.s32.totalorder %s11, 7
      %p62 = scmp.ne.s32.totalorder %s57, %s59
      %p63 = scmp.eq.s32.totalorder %s11, 0
      %p64 = por %p62, %p63
      %p65 = scmp.ne.s32.totalorder %s57, %s59
      %p66 = scmp.eq.s32.totalorder %s16, 7
      %p67 = por %p65, %p66
      %p68 = scmp.ne.s32.totalorder %s59, %s60
      %p69 = scmp.eq.s32.totalorder %s16, 0
      %p70 = por %p68, %p69
      %p71 = scmp.ne.s32.totalorder %s59, %s60
      %p72 = scmp.eq.s32.totalorder %s17, 7
      %p73 = por %p71, %p72
      %p75 = scmp.ne.s32.totalorder %s60, %s74
      %p76 = scmp.eq.s32.totalorder %s17, 0
      %p77 = por %p75, %p76
      %s79 = sadd.s32 %s78, 1
      %p82 = scmp.eq.s32.totalorder %s11, 7
      %p83 = scmp.ne.s32.totalorder %s78, %s80
      %p84 = scmp.eq.s32.totalorder %s11, 0
      %p85 = por %p83, %p84
      %p86 = scmp.ne.s32.totalorder %s78, %s80
      %p87 = scmp.eq.s32.totalorder %s16, 7
      %p88 = por %p86, %p87
      %p89 = scmp.ne.s32.totalorder %s80, %s81
      %p90 = scmp.eq.s32.totalorder %s16, 0
      %p91 = por %p89, %p90
      %p92 = scmp.ne.s32.totalorder %s80, %s81
      %p93 = scmp.eq.s32.totalorder %s17, 7
      %p94 = por %p92, %p93
      %p96 = scmp.ne.s32.totalorder %s81, %s95
      %p97 = scmp.eq.s32.totalorder %s17, 0
      %p98 = por %p96, %p97
      %s99 = ssub.s32 %s19, %s26
      %p100 = scmp.eq.s32.totalorder %s99, 0
      %s102 = sadd.s32 %s101, 1
      %s103 = scalar_select %p100, %s101, %s102
      %p106 = pneg %p100
      %p107 = scmp.eq.s32.totalorder %s11, 7
      %p108 = por %p106, %p107
      %p109 = scmp.ne.s32.totalorder %s101, %s104
      %p110 = scmp.eq.s32.totalorder %s11, 0
      %p111 = por %p109, %p110
      %p112 = scmp.ne.s32.totalorder %s101, %s104
      %p113 = scmp.eq.s32.totalorder %s16, 7
      %p114 = por %p112, %p113
      %p115 = scmp.ne.s32.totalorder %s104, %s105
      %p116 = scmp.eq.s32.totalorder %s16, 0
      %p117 = por %p115, %p116
      %p118 = scmp.ne.s32.totalorder %s104, %s105
      %p119 = scmp.eq.s32.totalorder %s17, 7
      %p120 = por %p118, %p119
      %p122 = scmp.ne.s32.totalorder %s105, %s121
      %p123 = scmp.eq.s32.totalorder %s17, 0
      %p124 = por %p122, %p123
      %s125 = ssub.s32 %s19, %s26
      %p126 = scmp.eq.s32.totalorder %s125, 0
      %s128 = sadd.s32 %s127, 1
      %s129 = scalar_select %p126, %s127, %s128
      %p132 = pneg %p126
      %p133 = scmp.eq.s32.totalorder %s11, 7
      %p134 = por %p132, %p133
      %p135 = scmp.ne.s32.totalorder %s127, %s130
      %p136 = scmp.eq.s32.totalorder %s11, 0
      %p137 = por %p135, %p136
      %p138 = scmp.ne.s32.totalorder %s127, %s130
      %p139 = scmp.eq.s32.totalorder %s16, 7
      %p140 = por %p138, %p139
      %p141 = scmp.ne.s32.totalorder %s130, %s131
      %p142 = scmp.eq.s32.totalorder %s16, 0
      %p143 = por %p141, %p142
      %p144 = scmp.ne.s32.totalorder %s130, %s131
      %p145 = scmp.eq.s32.totalorder %s17, 7
      %p146 = por %p144, %p145
      %p148 = scmp.ne.s32.totalorder %s131, %s147
      %p149 = scmp.eq.s32.totalorder %s17, 0
      %p150 = por %p148, %p149
      %s151 = ssub.s32 %s18, %s30
      %p152 = scmp.eq.s32.totalorder %s151, 0
      %s154 = sadd.s32 %s153, 1
      %s155 = scalar_select %p152, %s153, %s154
      %p158 = pneg %p152
      %p159 = scmp.eq.s32.totalorder %s11, 7
      %p160 = por %p158, %p159
      %p161 = scmp.ne.s32.totalorder %s153, %s156
      %p162 = scmp.eq.s32.totalorder %s11, 0
      %p163 = por %p161, %p162
      %p164 = scmp.ne.s32.totalorder %s153, %s156
      %p165 = scmp.eq.s32.totalorder %s16, 7
      %p166 = por %p164, %p165
      %p167 = scmp.ne.s32.totalorder %s156, %s157
      %p168 = scmp.eq.s32.totalorder %s16, 0
      %p169 = por %p167, %p168
      %p170 = scmp.ne.s32.totalorder %s156, %s157
      %p171 = scmp.eq.s32.totalorder %s17, 7
      %p172 = por %p170, %p171
      %p174 = scmp.ne.s32.totalorder %s157, %s173
      %p175 = scmp.eq.s32.totalorder %s17, 0
      %p176 = por %p174, %p175
      %p177 = scmp.le.s32.totalorder 1, %s11
      %p178 = scmp.lt.s32.totalorder %s11, 9
      %p179 = pnand %p177, %p178
      %p180 = pneg %p179
      // Predicated region
      $region9: #{vq_tower_forward.1} parent=5 // pred_check
        _
      $region10: #{vq_tower_forward.1} parent=5 // pred_check_branch
        %182 = sbr.rel (%p179) target = $region12
      $region11: #{vq_tower_forward.1} parent=5 // pred_region
        %s183 = ssub.s32 %s11, 1
        // Predicated region
        $region13: #{vq_tower_forward.1} parent=11 // pred_check
          %p184 = pneg %p70
        $region14: #{vq_tower_forward.1} parent=11 // pred_check_branch
          %186 = sbr.rel (%p184) target = $region16
        $region15: #{vq_tower_forward.1} parent=11 // pred_region
          _
        $region16: #{vq_tower_forward.1} parent=11 // pred_fallthru
          _
        // Predicated region
        $region17: #{vq_tower_forward.1} parent=11 // pred_check
          %p187 = pneg %p91
        $region18: #{vq_tower_forward.1} parent=11 // pred_check_branch
          %189 = sbr.rel (%p187) target = $region20
        $region19: #{vq_tower_forward.1} parent=11 // pred_region
          _
        $region20: #{vq_tower_forward.1} parent=11 // pred_fallthru
          _
      $region12: #{vq_tower_forward.1} parent=5 // pred_fallthru
        _
      %p190 = scmp.lt.s32.totalorder %s11, 8
      // Predicated region
      $region21: #{vq_tower_forward.1} parent=5 // pred_check
        %p191 = pneg %p190
      $region22: #{vq_tower_forward.1} parent=5 // pred_check_branch
        %193 = sbr.rel (%p191) target = $region24
      $region23: #{vq_tower_forward.1} parent=5 // pred_region
        // Predicated region
        $region25: #{vq_tower_forward.1} parent=23 // pred_check
          %p194 = pneg %p43
        $region26: #{vq_tower_forward.1} parent=23 // pred_check_branch
          %196 = sbr.rel (%p194) target = $region28
        $region27: #{vq_tower_forward.1} parent=23 // pred_region
          %s197 = smul.u32 16, %s18
          %p198 = scmp.lt.s32.totalorder %s197, 63
          %s199 = scalar_select %p198, %s197, 63
          %s200 = smul.addr %s199, 2
          %s201 = smul.addr %s200, 4
          %s202 = scalar_lea.vmem %s0, %s201
          %s203 = smul.u32 16, %s18
        $region28: #{vq_tower_forward.1} parent=23 // pred_fallthru
          _
        // Predicated region
        $region29: #{vq_tower_forward.1} parent=23 // pred_check
          %p204 = pneg %p111
        $region30: #{vq_tower_forward.1} parent=23 // pred_check_branch
          %206 = sbr.rel (%p204) target = $region32
        $region31: #{vq_tower_forward.1} parent=23 // pred_region
          %s207 = sand.u32 %s101, 1
          %s208 = sand.u32 %s101, 1
          %s209 = smul.addr %s208, 128
          %s210 = scalar_lea.vmem [#allocation5], %s209
          %s211 = smul.u32 2, %s19
          %s212 = smul.addr %s211, 4
          %s213 = scalar_lea.vmem %s3, %s212
          // Predicated region
          $region33: #{vq_tower_forward.1} parent=31 // pred_check
            _
          $region34: #{vq_tower_forward.1} parent=31 // pred_check_branch
            %215 = sbr.rel (0) target = $region36
          $region35: #{vq_tower_forward.1} parent=31 // pred_region
            // Predicated region
            $region37: #{vq_tower_forward.1} parent=35 // pred_check
              _
            $region38: #{vq_tower_forward.1} parent=35 // pred_check_branch
              %217 = sbr.rel (0) target = $region40
            $region39: #{vq_tower_forward.1} parent=35 // pred_region
              // Predicated region
              $region52: #{vq_tower_forward.1} parent=39 // pred_check
                _
              $region53: #{vq_tower_forward.1} parent=39 // pred_check_branch
                %263 = sbr.rel (0) target = $region55
              $region54: #{vq_tower_forward.1} parent=39 // pred_region
                loop: start=0, step=1, limit=1
                $region56: #{vq_tower_forward.1} parent=54 // loop_pre_header
                  _
                $region57: #{vq_tower_forward.1} parent=54 // loop_header
                  %s265 = sphi 0, %s269
                  %p266 = scmp.ge.s32.totalorder %s265, 1
                  %s270 = sphi %s213, %s213
                  %s271 = sphi %s210, %s210
                $region58: #{vq_tower_forward.1} parent=54 // loop_header_branch
                  %268 = sbr.rel (%p266) target = $region62
                $region59: #{vq_tower_forward.1} parent=54 // loop_body
                  %v272 = vld [vmem:[%s270] sm:$0xff]
                  %273 = vst [vmem:[%s271] sm:$0xff] %v272
                  %v274 = vld [vmem:[%s270 + $0x10] sm:$0xff]
                  %275 = vst [vmem:[%s271 + $0x8] sm:$0xff] %v274
                  %v276 = vld [vmem:[%s270 + $0x20] sm:$0xff]
                  %277 = vst [vmem:[%s271 + $0x10] sm:$0xff] %v276
                  %v278 = vld [vmem:[%s270 + $0x30] sm:$0xff]
                  %279 = vst [vmem:[%s271 + $0x18] sm:$0xff] %v278
                  %v280 = vld [vmem:[%s270 + $0x40] sm:$0xff]
                  %281 = vst [vmem:[%s271 + $0x20] sm:$0xff] %v280
                  %v282 = vld [vmem:[%s270 + $0x50] sm:$0xff]
                  %283 = vst [vmem:[%s271 + $0x28] sm:$0xff] %v282
                  %v284 = vld [vmem:[%s270 + $0x60] sm:$0xff]
                  %285 = vst [vmem:[%s271 + $0x30] sm:$0xff] %v284
                  %v286 = vld [vmem:[%s270 + $0x70] sm:$0xff]
                  %287 = vst [vmem:[%s271 + $0x38] sm:$0xff] %v286
                  %v288 = vld [vmem:[%s270 + $0x80] sm:$0xff]
                  %289 = vst [vmem:[%s271 + $0x40] sm:$0xff] %v288
                  %v290 = vld [vmem:[%s270 + $0x90] sm:$0xff]
                  %291 = vst [vmem:[%s271 + $0x48] sm:$0xff] %v290
                  %v292 = vld [vmem:[%s270 + $0xa0] sm:$0xff]
                  %293 = vst [vmem:[%s271 + $0x50] sm:$0xff] %v292
                  %v294 = vld [vmem:[%s270 + $0xb0] sm:$0xff]
                  %295 = vst [vmem:[%s271 + $0x58] sm:$0xff] %v294
                  %v296 = vld [vmem:[%s270 + $0xc0] sm:$0xff]
                  %297 = vst [vmem:[%s271 + $0x60] sm:$0xff] %v296
                  %v298 = vld [vmem:[%s270 + $0xd0] sm:$0xff]
                  %299 = vst [vmem:[%s271 + $0x68] sm:$0xff] %v298
                  %v300 = vld [vmem:[%s270 + $0xe0] sm:$0xff]
                  %301 = vst [vmem:[%s271 + $0x70] sm:$0xff] %v300
                  %v302 = vld [vmem:[%s270 + $0xf0] sm:$0xff]
                  %303 = vst [vmem:[%s271 + $0x78] sm:$0xff] %v302
                $region60: #{vq_tower_forward.1} parent=54 // loop_footer
                  %s269 = sadd.s32 1, %s265
                $region61: #{vq_tower_forward.1} parent=54 // loop_footer_branch
                  %264 = sbr.rel target = $region57
                $region62: #{vq_tower_forward.1} parent=54 // loop_exit
                  _
              $region55: #{vq_tower_forward.1} parent=39 // pred_fallthru
                _
              // Predicated region
              $region63: #{vq_tower_forward.1} parent=39 // pred_check
                _
              $region64: #{vq_tower_forward.1} parent=39 // pred_check_branch
                %305 = sbr.rel target = $region66
              $region65: #{vq_tower_forward.1} parent=39 // pred_region
                _
              $region66: #{vq_tower_forward.1} parent=39 // pred_fallthru
                _
            $region40: #{vq_tower_forward.1} parent=35 // pred_fallthru
              _
            // Predicated region
            $region41: #{vq_tower_forward.1} parent=35 // pred_check
              _
            $region42: #{vq_tower_forward.1} parent=35 // pred_check_branch
              %219 = sbr.rel target = $region44
            $region43: #{vq_tower_forward.1} parent=35 // pred_region
              %s221 = ssub.s32 256, 1
              loop: start=0, step=1, limit=1
              $region45: #{vq_tower_forward.1} parent=43 // loop_pre_header
                _
              $region46: #{vq_tower_forward.1} parent=43 // loop_header
                %s223 = sphi 0, %s227
                %p224 = scmp.ge.s32.totalorder %s223, 1
                %s228 = sphi %s213, %s213
                %s229 = sphi %s210, %s210
              $region47: #{vq_tower_forward.1} parent=43 // loop_header_branch
                %226 = sbr.rel (%p224) target = $region51
              $region48: #{vq_tower_forward.1} parent=43 // loop_body
                %v230 = vld [vmem:[%s228] sm:%s221]
                %231 = vst [vmem:[%s229] sm:%s221] %v230
                %v232 = vld [vmem:[%s228 + $0x10] sm:%s221]
                %233 = vst [vmem:[%s229 + $0x8] sm:%s221] %v232
                %v234 = vld [vmem:[%s228 + $0x20] sm:%s221]
                %235 = vst [vmem:[%s229 + $0x10] sm:%s221] %v234
                %v236 = vld [vmem:[%s228 + $0x30] sm:%s221]
                %237 = vst [vmem:[%s229 + $0x18] sm:%s221] %v236
                %v238 = vld [vmem:[%s228 + $0x40] sm:%s221]
                %239 = vst [vmem:[%s229 + $0x20] sm:%s221] %v238
                %v240 = vld [vmem:[%s228 + $0x50] sm:%s221]
                %241 = vst [vmem:[%s229 + $0x28] sm:%s221] %v240
                %v242 = vld [vmem:[%s228 + $0x60] sm:%s221]
                %243 = vst [vmem:[%s229 + $0x30] sm:%s221] %v242
                %v244 = vld [vmem:[%s228 + $0x70] sm:%s221]
                %245 = vst [vmem:[%s229 + $0x38] sm:%s221] %v244
                %v246 = vld [vmem:[%s228 + $0x80] sm:%s221]
                %247 = vst [vmem:[%s229 + $0x40] sm:%s221] %v246
                %v248 = vld [vmem:[%s228 + $0x90] sm:%s221]
                %249 = vst [vmem:[%s229 + $0x48] sm:%s221] %v248
                %v250 = vld [vmem:[%s228 + $0xa0] sm:%s221]
                %251 = vst [vmem:[%s229 + $0x50] sm:%s221] %v250
                %v252 = vld [vmem:[%s228 + $0xb0] sm:%s221]
                %253 = vst [vmem:[%s229 + $0x58] sm:%s221] %v252
                %v254 = vld [vmem:[%s228 + $0xc0] sm:%s221]
                %255 = vst [vmem:[%s229 + $0x60] sm:%s221] %v254
                %v256 = vld [vmem:[%s228 + $0xd0] sm:%s221]
                %257 = vst [vmem:[%s229 + $0x68] sm:%s221] %v256
                %v258 = vld [vmem:[%s228 + $0xe0] sm:%s221]
                %259 = vst [vmem:[%s229 + $0x70] sm:%s221] %v258
                %v260 = vld [vmem:[%s228 + $0xf0] sm:%s221]
                %261 = vst [vmem:[%s229 + $0x78] sm:%s221] %v260
              $region49: #{vq_tower_forward.1} parent=43 // loop_footer
                %s227 = sadd.s32 1, %s223
              $region50: #{vq_tower_forward.1} parent=43 // loop_footer_branch
                %222 = sbr.rel target = $region46
              $region51: #{vq_tower_forward.1} parent=43 // loop_exit
                _
            $region44: #{vq_tower_forward.1} parent=35 // pred_fallthru
              _
          $region36: #{vq_tower_forward.1} parent=31 // pred_fallthru
            _
          %306 = vnop
        $region32: #{vq_tower_forward.1} parent=23 // pred_fallthru
          _
        // Predicated region
        $region67: #{vq_tower_forward.1} parent=23 // pred_check
          %p307 = pneg %p137
        $region68: #{vq_tower_forward.1} parent=23 // pred_check_branch
          %309 = sbr.rel (%p307) target = $region70
        $region69: #{vq_tower_forward.1} parent=23 // pred_region
          %s310 = smul.u32 2, %s19
          %p311 = scmp.lt.s32.totalorder %s310, 3
          %s312 = scalar_select %p311, %s310, 3
          %s313 = scalar_lea.vmem %s4, %s312
          %s314 = smul.u32 2, %s19
        $region70: #{vq_tower_forward.1} parent=23 // pred_fallthru
          _
      $region24: #{vq_tower_forward.1} parent=5 // pred_fallthru
        _
      %p315 = scmp.le.s32.totalorder 1, %s11
      %p316 = scmp.lt.s32.totalorder %s11, 9
      %p317 = pnand %p315, %p316
      %p318 = pneg %p317
      // Predicated region
      $region71: #{vq_tower_forward.1} parent=5 // pred_check
        _
      $region72: #{vq_tower_forward.1} parent=5 // pred_check_branch
        %320 = sbr.rel (%p317) target = $region74
      $region73: #{vq_tower_forward.1} parent=5 // pred_region
        %s321 = ssub.s32 %s11, 1
        %s322 = sand.u32 %s104, 1
        %s323 = sand.u32 %s104, 1
        %s324 = smul.addr %s323, 128
        %s325 = scalar_lea.vmem [#allocation5], %s324
        // Predicated region
        $region75: #{vq_tower_forward.1} parent=73 // pred_check
          %p326 = pneg %p117
        $region76: #{vq_tower_forward.1} parent=73 // pred_check_branch
          %328 = sbr.rel (%p326) target = $region78
        $region77: #{vq_tower_forward.1} parent=73 // pred_region
          _
        $region78: #{vq_tower_forward.1} parent=73 // pred_fallthru
          _
        %s329 = smul.u32 16, %s20
        %p330 = scmp.lt.s32.totalorder %s329, 63
        %s331 = scalar_select %p330, %s329, 63
        %s332 = smul.addr %s331, 2
        %s333 = smul.addr %s332, 4
        %s334 = scalar_lea.vmem %s0, %s333
        %p335 = pneg %p49
        %p336 = pneg %p46
        %p337 = pneg %p70
        %p338 = pneg %p67
        %p339 = pneg %p91
        %p340 = pneg %p88
        %s341 = sand.u32 %s104, 1
        %s342 = sand.u32 %s104, 1
        %s343 = smul.addr %s342, 128
        %s344 = scalar_lea.vmem [#allocation5], %s343
        %p345 = pneg %p117
        %p346 = pneg %p114
        %s347 = smul.u32 2, %s21
        %p348 = scmp.lt.s32.totalorder %s347, 3
        %s349 = scalar_select %p348, %s347, 3
        %s350 = scalar_lea.vmem %s4, %s349
        %p351 = pneg %p143
        %p352 = pneg %p140
        %p353 = pneg %p169
        %p354 = pneg %p166
        %s355 = smul.u32 16, %s20
        %p356 = scmp.lt.s32.totalorder %s355, 63
        %s357 = scalar_select %p356, %s355, 63
        %s358 = smul.addr %s357, 8
        %s359 = scalar_lea.vmem %s5, %s358
        %s360 = smul.u32 16, %s20
        %p361 = scmp.lt.s32.totalorder %s360, 63
        %s362 = scalar_select %p361, %s360, 63
        %s363 = smul.addr %s362, 2
        %s364 = smul.addr %s363, 4
        %s365 = scalar_lea.vmem %s0, %s364
        %s366 = smul.u32 16, %s20
        %s367 = smul.u32 2, %s21
        %s368 = smul.u32 2, %s21
        %p369 = scmp.lt.s32.totalorder %s368, 3
        %s370 = scalar_select %p369, %s368, 3
        %s371 = scalar_lea.vmem %s4, %s370
        %s372 = smul.u32 2, %s21
        %s373 = smul.u32 16, %s20
        %p374 = scmp.lt.s32.totalorder %s373, 63
        %s375 = scalar_select %p374, %s373, 63
        %s376 = smul.addr %s375, 8
        %s377 = scalar_lea.vmem %s5, %s376
        %s378 = smul.u32 16, %s20
        %p379 = scmp.eq.s32.totalorder %s21, 0
        // Predicated region
        $region79: #{vq_tower_forward.1} parent=73 // pred_check
          %p380 = pneg %p379
        $region80: #{vq_tower_forward.1} parent=73 // pred_check_branch
          %382 = sbr.rel (%p380) target = $region82
        $region81: #{vq_tower_forward.1} parent=73 // pred_region
          %v383 = vld [vmem:[%s365] sm:$0xff]
          %v384 = vld [vmem:[%s365 + $0x8] sm:$0xff]
          %v385 = vld [vmem:[%s365 + $0x10] sm:$0xff]
          %v386 = vld [vmem:[%s365 + $0x18] sm:$0xff]
          %v387 = vld [vmem:[%s365 + $0x20] sm:$0xff]
          %v388 = vld [vmem:[%s365 + $0x28] sm:$0xff]
          %v389 = vld [vmem:[%s365 + $0x30] sm:$0xff]
          %v390 = vld [vmem:[%s365 + $0x38] sm:$0xff]
          %v391 = vld [vmem:[%s365 + $0x40] sm:$0xff]
          %v392 = vld [vmem:[%s365 + $0x48] sm:$0xff]
          %v393 = vld [vmem:[%s365 + $0x50] sm:$0xff]
          %v394 = vld [vmem:[%s365 + $0x58] sm:$0xff]
          %v395 = vld [vmem:[%s365 + $0x60] sm:$0xff]
          %v396 = vld [vmem:[%s365 + $0x68] sm:$0xff]
          %v397 = vld [vmem:[%s365 + $0x70] sm:$0xff]
          %v398 = vld [vmem:[%s365 + $0x78] sm:$0xff]
          %v399 = vld [vmem:[%s1] sm:$0xf]
          %v400 = vld [vmem:[%s1 + $0x4] sm:$0xf]
          %v401 = vld [vmem:[%s1 + $0x8] sm:$0xf]
          %v402 = vld [vmem:[%s1 + $0xc] sm:$0xf]
          %v403 = vld [vmem:[%s1 + $0x10] sm:$0xf]
          %v404 = vld [vmem:[%s1 + $0x14] sm:$0xf]
          %v405 = vld [vmem:[%s1 + $0x18] sm:$0xf]
          %v406 = vld [vmem:[%s1 + $0x1c] sm:$0xf]
          %v407 = vld [vmem:[%s1 + $0x20] sm:$0xf]
          %v408 = vld [vmem:[%s1 + $0x24] sm:$0xf]
          %v409 = vld [vmem:[%s1 + $0x28] sm:$0xf]
          %v410 = vld [vmem:[%s1 + $0x2c] sm:$0xf]
          %v411 = vld [vmem:[%s1 + $0x30] sm:$0xf]
          %v412 = vld [vmem:[%s1 + $0x34] sm:$0xf]
          %v413 = vld [vmem:[%s1 + $0x38] sm:$0xf]
          %v414 = vld [vmem:[%s1 + $0x3c] sm:$0xf]
          %v415 = vld [vmem:[%s1 + $0x40] sm:$0xf]
          %v416 = vld [vmem:[%s1 + $0x44] sm:$0xf]
          %v417 = vld [vmem:[%s1 + $0x48] sm:$0xf]
          %v418 = vld [vmem:[%s1 + $0x4c] sm:$0xf]
          %v419 = vld [vmem:[%s1 + $0x50] sm:$0xf]
          %v420 = vld [vmem:[%s1 + $0x54] sm:$0xf]
          %v421 = vld [vmem:[%s1 + $0x58] sm:$0xf]
          %v422 = vld [vmem:[%s1 + $0x5c] sm:$0xf]
          %v423 = vld [vmem:[%s1 + $0x60] sm:$0xf]
          %v424 = vld [vmem:[%s1 + $0x64] sm:$0xf]
          %v425 = vld [vmem:[%s1 + $0x68] sm:$0xf]
          %v426 = vld [vmem:[%s1 + $0x6c] sm:$0xf]
          %v427 = vld [vmem:[%s1 + $0x70] sm:$0xf]
          %v428 = vld [vmem:[%s1 + $0x74] sm:$0xf]
          %v429 = vld [vmem:[%s1 + $0x78] sm:$0xf]
          %v430 = vld [vmem:[%s1 + $0x7c] sm:$0xf]
          %v431 = vld [vmem:[%s2] sm:$0x1]
          %v433 = vperm.slane %v431, 0
          %v451 = vunpack.c.l.b16 %v383
          %v452 = vunpack.c.h.b16 %v383
          %v453 = vunpack.c.l.b16 %v384
          %v454 = vunpack.c.h.b16 %v384
          %v455 = vunpack.c.l.b16 %v385
          %v456 = vunpack.c.h.b16 %v385
          %v457 = vunpack.c.l.b16 %v386
          %v458 = vunpack.c.h.b16 %v386
          %v459 = vunpack.c.l.b16 %v387
          %v460 = vunpack.c.h.b16 %v387
          %v461 = vunpack.c.l.b16 %v388
          %v462 = vunpack.c.h.b16 %v388
          %v463 = vunpack.c.l.b16 %v389
          %v464 = vunpack.c.h.b16 %v389
          %v465 = vunpack.c.l.b16 %v390
          %v466 = vunpack.c.h.b16 %v390
          %v467 = vunpack.c.l.b16 %v391
          %v468 = vunpack.c.h.b16 %v391
          %v469 = vunpack.c.l.b16 %v392
          %v470 = vunpack.c.h.b16 %v392
          %v471 = vunpack.c.l.b16 %v393
          %v472 = vunpack.c.h.b16 %v393
          %v473 = vunpack.c.l.b16 %v394
          %v474 = vunpack.c.h.b16 %v394
          %v475 = vunpack.c.l.b16 %v395
          %v476 = vunpack.c.h.b16 %v395
          %v477 = vunpack.c.l.b16 %v396
          %v478 = vunpack.c.h.b16 %v396
          %v479 = vunpack.c.l.b16 %v397
          %v480 = vunpack.c.h.b16 %v397
          %v481 = vunpack.c.l.b16 %v398
          %v482 = vunpack.c.h.b16 %v398
          %v483 = vpack.c.b16 %v453, %v451
          %v484 = vpack.c.b16 %v454, %v452
          %v485 = vpack.c.b16 %v457, %v455
          %v486 = vpack.c.b16 %v458, %v456
          %v487 = vpack.c.b16 %v461, %v459
          %v488 = vpack.c.b16 %v462, %v460
          %v489 = vpack.c.b16 %v465, %v463
          %v490 = vpack.c.b16 %v466, %v464
          %v491 = vpack.c.b16 %v469, %v467
          %v492 = vpack.c.b16 %v470, %v468
          %v493 = vpack.c.b16 %v473, %v471
          %v494 = vpack.c.b16 %v474, %v472
          %v495 = vpack.c.b16 %v477, %v475
          %v496 = vpack.c.b16 %v478, %v476
          %v497 = vpack.c.b16 %v481, %v479
          %v498 = vpack.c.b16 %v482, %v480
          %v547 = vunpack.c.l.b16 %v399
          %v548 = vunpack.c.l.b16 %v400
          %v549 = vunpack.c.l.b16 %v401
          %v550 = vunpack.c.l.b16 %v402
          %v551 = vunpack.c.l.b16 %v403
          %v552 = vunpack.c.l.b16 %v404
          %v553 = vunpack.c.l.b16 %v405
          %v554 = vunpack.c.l.b16 %v406
          %v555 = vunpack.c.l.b16 %v407
          %v556 = vunpack.c.l.b16 %v408
          %v557 = vunpack.c.l.b16 %v409
          %v558 = vunpack.c.l.b16 %v410
          %v559 = vunpack.c.l.b16 %v411
          %v560 = vunpack.c.l.b16 %v412
          %v561 = vunpack.c.l.b16 %v413
          %v562 = vunpack.c.l.b16 %v414
          %v563 = vunpack.c.l.b16 %v415
          %v564 = vunpack.c.l.b16 %v416
          %v565 = vunpack.c.l.b16 %v417
          %v566 = vunpack.c.l.b16 %v418
          %v567 = vunpack.c.l.b16 %v419
          %v568 = vunpack.c.l.b16 %v420
          %v569 = vunpack.c.l.b16 %v421
          %v570 = vunpack.c.l.b16 %v422
          %v571 = vunpack.c.l.b16 %v423
          %v572 = vunpack.c.l.b16 %v424
          %v573 = vunpack.c.l.b16 %v425
          %v574 = vunpack.c.l.b16 %v426
          %v575 = vunpack.c.l.b16 %v427
          %v576 = vunpack.c.l.b16 %v428
          %v577 = vunpack.c.l.b16 %v429
          %v578 = vunpack.c.l.b16 %v430
          %v579 = vpack.c.b16 %v548, %v547
          %v580 = vpack.c.b16 %v550, %v549
          %v581 = vpack.c.b16 %v552, %v551
          %v582 = vpack.c.b16 %v554, %v553
          %v583 = vpack.c.b16 %v556, %v555
          %v584 = vpack.c.b16 %v558, %v557
          %v585 = vpack.c.b16 %v560, %v559
          %v586 = vpack.c.b16 %v562, %v561
          %v587 = vpack.c.b16 %v564, %v563
          %v588 = vpack.c.b16 %v566, %v565
          %v589 = vpack.c.b16 %v568, %v567
          %v590 = vpack.c.b16 %v570, %v569
          %v591 = vpack.c.b16 %v572, %v571
          %v592 = vpack.c.b16 %v574, %v573
          %v593 = vpack.c.b16 %v576, %v575
          %v594 = vpack.c.b16 %v578, %v577
          %611 = vmatpush.bf16.msra.mxu0 %v586
          %612 = vmatpush.bf16.msra.mxu0 %v585
          %613 = vmatpush.bf16.msra.mxu0 %v584
          %614 = vmatpush.bf16.msra.mxu0 %v583
          %615 = vmatpush.bf16.msra.mxu0 %v582
          %616 = vmatpush.bf16.msra.mxu0 %v581
          %617 = vmatpush.bf16.msra.mxu0 %v580
          %618 = vmatpush.bf16.msra.mxu0 %v579
          %619 = vmatmul.bf16.gmra.mxu0 %v483
          %v620 = vpop.f32.mrf.mxu0
          %v621 = vadd.f32 %v433, %v620
          %v622 = vpop.f32.mrf.mxu0
          %v623 = vadd.f32 %v433, %v622
          %624 = vmatmul.bf16.gmra.mxu0 %v485
          %v625 = vpop.f32.mrf.mxu0
          %v626 = vadd.f32 %v433, %v625
          %v627 = vpop.f32.mrf.mxu0
          %v628 = vadd.f32 %v433, %v627
          %629 = vmatmul.bf16.gmra.mxu0 %v487
          %v630 = vpop.f32.mrf.mxu0
          %v631 = vadd.f32 %v433, %v630
          %v632 = vpop.f32.mrf.mxu0
          %v633 = vadd.f32 %v433, %v632
          %634 = vmatmul.bf16.gmra.mxu0 %v489
          %v635 = vpop.f32.mrf.mxu0
          %v636 = vadd.f32 %v433, %v635
          %v637 = vpop.f32.mrf.mxu0
          %v638 = vadd.f32 %v433, %v637
          %639 = vmatmul.bf16.gmra.mxu0 %v491
          %v640 = vpop.f32.mrf.mxu0
          %v641 = vadd.f32 %v433, %v640
          %v642 = vpop.f32.mrf.mxu0
          %v643 = vadd.f32 %v433, %v642
          %644 = vmatmul.bf16.gmra.mxu0 %v493
          %v645 = vpop.f32.mrf.mxu0
          %v646 = vadd.f32 %v433, %v645
          %v647 = vpop.f32.mrf.mxu0
          %v648 = vadd.f32 %v433, %v647
          %649 = vmatmul.bf16.gmra.mxu0 %v495
          %v650 = vpop.f32.mrf.mxu0
          %v651 = vadd.f32 %v433, %v650
          %v652 = vpop.f32.mrf.mxu0
          %v653 = vadd.f32 %v433, %v652
          %654 = vmatmul.bf16.gmra.mxu0 %v497
          %v655 = vpop.f32.mrf.mxu0
          %v656 = vadd.f32 %v433, %v655
          %v657 = vpop.f32.mrf.mxu0
          %v658 = vadd.f32 %v433, %v657
          %659 = vdwg.mxu0
          %660 = vmatpush.bf16.msra.mxu0 %v594
          %661 = vmatpush.bf16.msra.mxu0 %v593
          %662 = vmatpush.bf16.msra.mxu0 %v592
          %663 = vmatpush.bf16.msra.mxu0 %v591
          %664 = vmatpush.bf16.msra.mxu0 %v590
          %665 = vmatpush.bf16.msra.mxu0 %v589
          %666 = vmatpush.bf16.msra.mxu0 %v588
          %667 = vmatpush.bf16.msra.mxu0 %v587
          %668 = vmatmul.bf16.gmra.mxu0 %v484
          %v669 = vpop.f32.mrf.mxu0
          %v670 = vadd.f32 %v621, %v669
          %v671 = vpop.f32.mrf.mxu0
          %v672 = vadd.f32 %v623, %v671
          %673 = vmatmul.bf16.gmra.mxu0 %v486
          %v674 = vpop.f32.mrf.mxu0
          %v675 = vadd.f32 %v626, %v674
          %v676 = vpop.f32.mrf.mxu0
          %v677 = vadd.f32 %v628, %v676
          %678 = vmatmul.bf16.gmra.mxu0 %v488
          %v679 = vpop.f32.mrf.mxu0
          %v680 = vadd.f32 %v631, %v679
          %v681 = vpop.f32.mrf.mxu0
          %v682 = vadd.f32 %v633, %v681
          %683 = vmatmul.bf16.gmra.mxu0 %v490
          %v684 = vpop.f32.mrf.mxu0
          %v685 = vadd.f32 %v636, %v684
          %v686 = vpop.f32.mrf.mxu0
          %v687 = vadd.f32 %v638, %v686
          %688 = vmatmul.bf16.gmra.mxu0 %v492
          %v689 = vpop.f32.mrf.mxu0
          %v690 = vadd.f32 %v641, %v689
          %v691 = vpop.f32.mrf.mxu0
          %v692 = vadd.f32 %v643, %v691
          %693 = vmatmul.bf16.gmra.mxu0 %v494
          %v694 = vpop.f32.mrf.mxu0
          %v695 = vadd.f32 %v646, %v694
          %v696 = vpop.f32.mrf.mxu0
          %v697 = vadd.f32 %v648, %v696
          %698 = vmatmul.bf16.gmra.mxu0 %v496
          %v699 = vpop.f32.mrf.mxu0
          %v700 = vadd.f32 %v651, %v699
          %v701 = vpop.f32.mrf.mxu0
          %v702 = vadd.f32 %v653, %v701
          %703 = vmatmul.bf16.gmra.mxu0 %v498
          %v704 = vpop.f32.mrf.mxu0
          %v705 = vadd.f32 %v656, %v704
          %v706 = vpop.f32.mrf.mxu0
          %v707 = vadd.f32 %v658, %v706
          %708 = vdwg.mxu0
          %v709 = vpack.c.bf16 %v670, %v670
          %v710 = vpack.c.bf16 %v672, %v672
          %v711 = vpack.c.bf16 %v675, %v675
          %v712 = vpack.c.bf16 %v677, %v677
          %v713 = vpack.c.bf16 %v680, %v680
          %v714 = vpack.c.bf16 %v682, %v682
          %v715 = vpack.c.bf16 %v685, %v685
          %v716 = vpack.c.bf16 %v687, %v687
          %v717 = vpack.c.bf16 %v690, %v690
          %v718 = vpack.c.bf16 %v692, %v692
          %v719 = vpack.c.bf16 %v695, %v695
          %v720 = vpack.c.bf16 %v697, %v697
          %v721 = vpack.c.bf16 %v700, %v700
          %v722 = vpack.c.bf16 %v702, %v702
          %v723 = vpack.c.bf16 %v705, %v705
          %v724 = vpack.c.bf16 %v707, %v707
          %725 = vst [vmem:[#allocation2] sm:$0xf] %v709
          %726 = vst [vmem:[#allocation2 + $0x4] sm:$0xf] %v710
          %727 = vst [vmem:[#allocation2 + $0x8] sm:$0xf] %v711
          %728 = vst [vmem:[#allocation2 + $0xc] sm:$0xf] %v712
          %729 = vst [vmem:[#allocation2 + $0x10] sm:$0xf] %v713
          %730 = vst [vmem:[#allocation2 + $0x14] sm:$0xf] %v714
          %731 = vst [vmem:[#allocation2 + $0x18] sm:$0xf] %v715
          %732 = vst [vmem:[#allocation2 + $0x1c] sm:$0xf] %v716
          %733 = vst [vmem:[#allocation2 + $0x20] sm:$0xf] %v717
          %734 = vst [vmem:[#allocation2 + $0x24] sm:$0xf] %v718
          %735 = vst [vmem:[#allocation2 + $0x28] sm:$0xf] %v719
          %736 = vst [vmem:[#allocation2 + $0x2c] sm:$0xf] %v720
          %737 = vst [vmem:[#allocation2 + $0x30] sm:$0xf] %v721
          %738 = vst [vmem:[#allocation2 + $0x34] sm:$0xf] %v722
          %739 = vst [vmem:[#allocation2 + $0x38] sm:$0xf] %v723
          %740 = vst [vmem:[#allocation2 + $0x3c] sm:$0xf] %v724
          %vm741 = vcmask 7168
          %742 = vst.msk [vmem:[#allocation3] sm:$0xff] %vm741, inf
          %743 = vst.msk [vmem:[#allocation3 + $0x8] sm:$0xff] %vm741, inf
          %744 = vst.msk [vmem:[#allocation3 + $0x10] sm:$0xff] %vm741, inf
          %745 = vst.msk [vmem:[#allocation3 + $0x18] sm:$0xff] %vm741, inf
          %746 = vst.msk [vmem:[#allocation3 + $0x20] sm:$0xff] %vm741, inf
          %747 = vst.msk [vmem:[#allocation3 + $0x28] sm:$0xff] %vm741, inf
          %748 = vst.msk [vmem:[#allocation3 + $0x30] sm:$0xff] %vm741, inf
          %749 = vst.msk [vmem:[#allocation3 + $0x38] sm:$0xff] %vm741, inf
          %750 = vst.msk [vmem:[#allocation3 + $0x40] sm:$0xff] %vm741, inf
          %751 = vst.msk [vmem:[#allocation3 + $0x48] sm:$0xff] %vm741, inf
          %752 = vst.msk [vmem:[#allocation3 + $0x50] sm:$0xff] %vm741, inf
          %753 = vst.msk [vmem:[#allocation3 + $0x58] sm:$0xff] %vm741, inf
          %754 = vst.msk [vmem:[#allocation3 + $0x60] sm:$0xff] %vm741, inf
          %755 = vst.msk [vmem:[#allocation3 + $0x68] sm:$0xff] %vm741, inf
          %756 = vst.msk [vmem:[#allocation3 + $0x70] sm:$0xff] %vm741, inf
          %757 = vst.msk [vmem:[#allocation3 + $0x78] sm:$0xff] %vm741, inf
          %758 = vst.msk [vmem:[#allocation4] sm:$0xff] %vm741, 0
          %759 = vst.msk [vmem:[#allocation4 + $0x8] sm:$0xff] %vm741, 0
          %760 = vst.msk [vmem:[#allocation4 + $0x10] sm:$0xff] %vm741, 0
          %761 = vst.msk [vmem:[#allocation4 + $0x18] sm:$0xff] %vm741, 0
          %762 = vst.msk [vmem:[#allocation4 + $0x20] sm:$0xff] %vm741, 0
          %763 = vst.msk [vmem:[#allocation4 + $0x28] sm:$0xff] %vm741, 0
          %764 = vst.msk [vmem:[#allocation4 + $0x30] sm:$0xff] %vm741, 0
          %765 = vst.msk [vmem:[#allocation4 + $0x38] sm:$0xff] %vm741, 0
          %766 = vst.msk [vmem:[#allocation4 + $0x40] sm:$0xff] %vm741, 0
          %767 = vst.msk [vmem:[#allocation4 + $0x48] sm:$0xff] %vm741, 0
          %768 = vst.msk [vmem:[#allocation4 + $0x50] sm:$0xff] %vm741, 0
          %769 = vst.msk [vmem:[#allocation4 + $0x58] sm:$0xff] %vm741, 0
          %770 = vst.msk [vmem:[#allocation4 + $0x60] sm:$0xff] %vm741, 0
          %771 = vst.msk [vmem:[#allocation4 + $0x68] sm:$0xff] %vm741, 0
          %772 = vst.msk [vmem:[#allocation4 + $0x70] sm:$0xff] %vm741, 0
          %773 = vst.msk [vmem:[#allocation4 + $0x78] sm:$0xff] %vm741, 0
        $region82: #{vq_tower_forward.1} parent=73 // pred_fallthru
          _
        %v774 = vld [vmem:[#allocation2] sm:$0xf]
        %v775 = vld [vmem:[#allocation2 + $0x4] sm:$0xf]
        %v776 = vld [vmem:[#allocation2 + $0x8] sm:$0xf]
        %v777 = vld [vmem:[#allocation2 + $0xc] sm:$0xf]
        %v778 = vld [vmem:[#allocation2 + $0x10] sm:$0xf]
        %v779 = vld [vmem:[#allocation2 + $0x14] sm:$0xf]
        %v780 = vld [vmem:[#allocation2 + $0x18] sm:$0xf]
        %v781 = vld [vmem:[#allocation2 + $0x1c] sm:$0xf]
        %v782 = vld [vmem:[#allocation2 + $0x20] sm:$0xf]
        %v783 = vld [vmem:[#allocation2 + $0x24] sm:$0xf]
        %v784 = vld [vmem:[#allocation2 + $0x28] sm:$0xf]
        %v785 = vld [vmem:[#allocation2 + $0x2c] sm:$0xf]
        %v786 = vld [vmem:[#allocation2 + $0x30] sm:$0xf]
        %v787 = vld [vmem:[#allocation2 + $0x34] sm:$0xf]
        %v788 = vld [vmem:[#allocation2 + $0x38] sm:$0xf]
        %v789 = vld [vmem:[#allocation2 + $0x3c] sm:$0xf]
        %v790 = vld [vmem:[#allocation3] sm:$0xff]
        %v791 = vld [vmem:[#allocation3 + $0x8] sm:$0xff]
        %v792 = vld [vmem:[#allocation3 + $0x10] sm:$0xff]
        %v793 = vld [vmem:[#allocation3 + $0x18] sm:$0xff]
        %v794 = vld [vmem:[#allocation3 + $0x20] sm:$0xff]
        %v795 = vld [vmem:[#allocation3 + $0x28] sm:$0xff]
        %v796 = vld [vmem:[#allocation3 + $0x30] sm:$0xff]
        %v797 = vld [vmem:[#allocation3 + $0x38] sm:$0xff]
        %v798 = vld [vmem:[#allocation3 + $0x40] sm:$0xff]
        %v799 = vld [vmem:[#allocation3 + $0x48] sm:$0xff]
        %v800 = vld [vmem:[#allocation3 + $0x50] sm:$0xff]
        %v801 = vld [vmem:[#allocation3 + $0x58] sm:$0xff]
        %v802 = vld [vmem:[#allocation3 + $0x60] sm:$0xff]
        %v803 = vld [vmem:[#allocation3 + $0x68] sm:$0xff]
        %v804 = vld [vmem:[#allocation3 + $0x70] sm:$0xff]
        %v805 = vld [vmem:[#allocation3 + $0x78] sm:$0xff]
        %v806 = vld [vmem:[#allocation4] sm:$0xff]
        %v807 = vld [vmem:[#allocation4 + $0x8] sm:$0xff]
        %v808 = vld [vmem:[#allocation4 + $0x10] sm:$0xff]
        %v809 = vld [vmem:[#allocation4 + $0x18] sm:$0xff]
        %v810 = vld [vmem:[#allocation4 + $0x20] sm:$0xff]
        %v811 = vld [vmem:[#allocation4 + $0x28] sm:$0xff]
        %v812 = vld [vmem:[#allocation4 + $0x30] sm:$0xff]
        %v813 = vld [vmem:[#allocation4 + $0x38] sm:$0xff]
        %v814 = vld [vmem:[#allocation4 + $0x40] sm:$0xff]
        %v815 = vld [vmem:[#allocation4 + $0x48] sm:$0xff]
        %v816 = vld [vmem:[#allocation4 + $0x50] sm:$0xff]
        %v817 = vld [vmem:[#allocation4 + $0x58] sm:$0xff]
        %v818 = vld [vmem:[#allocation4 + $0x60] sm:$0xff]
        %v819 = vld [vmem:[#allocation4 + $0x68] sm:$0xff]
        %v820 = vld [vmem:[#allocation4 + $0x70] sm:$0xff]
        %v821 = vld [vmem:[#allocation4 + $0x78] sm:$0xff]
        %s822 = smul.u32 %s21, 256
        %v823 = vld [vmem:[%s371] sm:$0x1]
        %v824 = vld [vmem:[%s325] sm:$0xf]
        %v825 = vld [vmem:[%s325 + $0x8] sm:$0xf]
        %v826 = vld [vmem:[%s325 + $0x10] sm:$0xf]
        %v827 = vld [vmem:[%s325 + $0x18] sm:$0xf]
        %v828 = vld [vmem:[%s325 + $0x20] sm:$0xf]
        %v829 = vld [vmem:[%s325 + $0x28] sm:$0xf]
        %v830 = vld [vmem:[%s325 + $0x30] sm:$0xf]
        %v831 = vld [vmem:[%s325 + $0x38] sm:$0xf]
        %v832 = vld [vmem:[%s325 + $0x40] sm:$0xf]
        %v833 = vld [vmem:[%s325 + $0x48] sm:$0xf]
        %v834 = vld [vmem:[%s325 + $0x50] sm:$0xf]
        %v835 = vld [vmem:[%s325 + $0x58] sm:$0xf]
        %v836 = vld [vmem:[%s325 + $0x60] sm:$0xf]
        %v837 = vld [vmem:[%s325 + $0x68] sm:$0xf]
        %v838 = vld [vmem:[%s325 + $0x70] sm:$0xf]
        %v839 = vld [vmem:[%s325 + $0x78] sm:$0xf]
        %v856 = vunpack.c.l.b16 %v774
        %v857 = vunpack.c.l.b16 %v775
        %v858 = vunpack.c.l.b16 %v776
        %v859 = vunpack.c.l.b16 %v777
        %v860 = vunpack.c.l.b16 %v778
        %v861 = vunpack.c.l.b16 %v779
        %v862 = vunpack.c.l.b16 %v780
        %v863 = vunpack.c.l.b16 %v781
        %v864 = vunpack.c.l.b16 %v782
        %v865 = vunpack.c.l.b16 %v783
        %v866 = vunpack.c.l.b16 %v784
        %v867 = vunpack.c.l.b16 %v785
        %v868 = vunpack.c.l.b16 %v786
        %v869 = vunpack.c.l.b16 %v787
        %v870 = vunpack.c.l.b16 %v788
        %v871 = vunpack.c.l.b16 %v789
        %v872 = vpack.c.b16 %v857, %v856
        %v873 = vpack.c.b16 %v859, %v858
        %v874 = vpack.c.b16 %v861, %v860
        %v875 = vpack.c.b16 %v863, %v862
        %v876 = vpack.c.b16 %v865, %v864
        %v877 = vpack.c.b16 %v867, %v866
        %v878 = vpack.c.b16 %v869, %v868
        %v879 = vpack.c.b16 %v871, %v870
        %v904 = vunpack.c.l.b16 %v824
        %v905 = vunpack.c.l.b16 %v825
        %v906 = vunpack.c.l.b16 %v826
        %v907 = vunpack.c.l.b16 %v827
        %v908 = vunpack.c.l.b16 %v828
        %v909 = vunpack.c.l.b16 %v829
        %v910 = vunpack.c.l.b16 %v830
        %v911 = vunpack.c.l.b16 %v831
        %v912 = vunpack.c.l.b16 %v832
        %v913 = vunpack.c.l.b16 %v833
        %v914 = vunpack.c.l.b16 %v834
        %v915 = vunpack.c.l.b16 %v835
        %v916 = vunpack.c.l.b16 %v836
        %v917 = vunpack.c.l.b16 %v837
        %v918 = vunpack.c.l.b16 %v838
        %v919 = vunpack.c.l.b16 %v839
        %v920 = vpack.c.b16 %v905, %v904
        %v921 = vpack.c.b16 %v907, %v906
        %v922 = vpack.c.b16 %v909, %v908
        %v923 = vpack.c.b16 %v911, %v910
        %v924 = vpack.c.b16 %v913, %v912
        %v925 = vpack.c.b16 %v915, %v914
        %v926 = vpack.c.b16 %v917, %v916
        %v927 = vpack.c.b16 %v919, %v918
        %936 = vmatpush.bf16.msra.mxu0 %v927
        %937 = vmatpush.bf16.msra.mxu0 %v926
        %938 = vmatpush.bf16.msra.mxu0 %v925
        %939 = vmatpush.bf16.msra.mxu0 %v924
        %940 = vmatpush.bf16.msra.mxu0 %v923
        %941 = vmatpush.bf16.msra.mxu0 %v922
        %942 = vmatpush.bf16.msra.mxu0 %v921
        %943 = vmatpush.bf16.msra.mxu0 %v920
        %944 = vmatmul.bf16.gmra.mxu0 %v872
        %v945 = vpop.f32.mrf.mxu0
        %v946 = vadd.f32 0.0, %v945
        %v947 = vpop.f32.mrf.mxu0
        %v948 = vadd.f32 0.0, %v947
        %949 = vmatmul.bf16.gmra.mxu0 %v873
        %v950 = vpop.f32.mrf.mxu0
        %v951 = vadd.f32 0.0, %v950
        %v952 = vpop.f32.mrf.mxu0
        %v953 = vadd.f32 0.0, %v952
        %954 = vmatmul.bf16.gmra.mxu0 %v874
        %v955 = vpop.f32.mrf.mxu0
        %v956 = vadd.f32 0.0, %v955
        %v957 = vpop.f32.mrf.mxu0
        %v958 = vadd.f32 0.0, %v957
        %959 = vmatmul.bf16.gmra.mxu0 %v875
        %v960 = vpop.f32.mrf.mxu0
        %v961 = vadd.f32 0.0, %v960
        %v962 = vpop.f32.mrf.mxu0
        %v963 = vadd.f32 0.0, %v962
        %964 = vmatmul.bf16.gmra.mxu0 %v876
        %v965 = vpop.f32.mrf.mxu0
        %v966 = vadd.f32 0.0, %v965
        %v967 = vpop.f32.mrf.mxu0
        %v968 = vadd.f32 0.0, %v967
        %969 = vmatmul.bf16.gmra.mxu0 %v877
        %v970 = vpop.f32.mrf.mxu0
        %v971 = vadd.f32 0.0, %v970
        %v972 = vpop.f32.mrf.mxu0
        %v973 = vadd.f32 0.0, %v972
        %974 = vmatmul.bf16.gmra.mxu0 %v878
        %v975 = vpop.f32.mrf.mxu0
        %v976 = vadd.f32 0.0, %v975
        %v977 = vpop.f32.mrf.mxu0
        %v978 = vadd.f32 0.0, %v977
        %979 = vmatmul.bf16.gmra.mxu0 %v879
        %v980 = vpop.f32.mrf.mxu0
        %v981 = vadd.f32 0.0, %v980
        %v982 = vpop.f32.mrf.mxu0
        %v983 = vadd.f32 0.0, %v982
        %984 = vdwg.mxu0
        %v985 = vmul.f32 %v946, 2.0
        %v986 = vmul.f32 %v948, 2.0
        %v987 = vmul.f32 %v951, 2.0
        %v988 = vmul.f32 %v953, 2.0
        %v989 = vmul.f32 %v956, 2.0
        %v990 = vmul.f32 %v958, 2.0
        %v991 = vmul.f32 %v961, 2.0
        %v992 = vmul.f32 %v963, 2.0
        %v993 = vmul.f32 %v966, 2.0
        %v994 = vmul.f32 %v968, 2.0
        %v995 = vmul.f32 %v971, 2.0
        %v996 = vmul.f32 %v973, 2.0
        %v997 = vmul.f32 %v976, 2.0
        %v998 = vmul.f32 %v978, 2.0
        %v999 = vmul.f32 %v981, 2.0
        %v1000 = vmul.f32 %v983, 2.0
        %v1002 = vperm.slane %v823, 0
        %v1004 = vsub.f32 %v1002, %v985
        %v1005 = vsub.f32 %v1002, %v986
        %v1006 = vsub.f32 %v1002, %v987
        %v1007 = vsub.f32 %v1002, %v988
        %v1008 = vsub.f32 %v1002, %v989
        %v1009 = vsub.f32 %v1002, %v990
        %v1010 = vsub.f32 %v1002, %v991
        %v1011 = vsub.f32 %v1002, %v992
        %v1012 = vsub.f32 %v1002, %v993
        %v1013 = vsub.f32 %v1002, %v994
        %v1014 = vsub.f32 %v1002, %v995
        %v1015 = vsub.f32 %v1002, %v996
        %v1016 = vsub.f32 %v1002, %v997
        %v1017 = vsub.f32 %v1002, %v998
        %v1018 = vsub.f32 %v1002, %v999
        %v1019 = vsub.f32 %v1002, %v1000
        %1020 = vmin.xlane.f32.xlu0 %v1004
        %v1021 = vpop.xlane.xlu0 %1020
        %1022 = vmin.xlane.f32.xlu0 %v1005
        %v1023 = vpop.xlane.xlu0 %1022
        %1024 = vmin.xlane.f32.xlu0 %v1006
        %v1025 = vpop.xlane.xlu0 %1024
        %1026 = vmin.xlane.f32.xlu0 %v1007
        %v1027 = vpop.xlane.xlu0 %1026
        %1028 = vmin.xlane.f32.xlu0 %v1008
        %v1029 = vpop.xlane.xlu0 %1028
        %1030 = vmin.xlane.f32.xlu0 %v1009
        %v1031 = vpop.xlane.xlu0 %1030
        %1032 = vmin.xlane.f32.xlu0 %v1010
        %v1033 = vpop.xlane.xlu0 %1032
        %1034 = vmin.xlane.f32.xlu0 %v1011
        %v1035 = vpop.xlane.xlu0 %1034
        %1036 = vmin.xlane.f32.xlu0 %v1012
        %v1037 = vpop.xlane.xlu0 %1036
        %1038 = vmin.xlane.f32.xlu0 %v1013
        %v1039 = vpop.xlane.xlu0 %1038
        %1040 = vmin.xlane.f32.xlu0 %v1014
        %v1041 = vpop.xlane.xlu0 %1040
        %1042 = vmin.xlane.f32.xlu0 %v1015
        %v1043 = vpop.xlane.xlu0 %1042
        %1044 = vmin.xlane.f32.xlu0 %v1016
        %v1045 = vpop.xlane.xlu0 %1044
        %1046 = vmin.xlane.f32.xlu0 %v1017
        %v1047 = vpop.xlane.xlu0 %1046
        %1048 = vmin.xlane.f32.xlu0 %v1018
        %v1049 = vpop.xlane.xlu0 %1048
        %1050 = vmin.xlane.f32.xlu0 %v1019
        %v1051 = vpop.xlane.xlu0 %1050
        %v1052 = vlaneseq
        %v1053 = vand.u32 %v1052, 127
        %vm1054 = vcmp.le.f32.partialorder %v1004, %v1021
        %vm1055 = vcmp.le.f32.partialorder %v1005, %v1023
        %vm1056 = vcmp.le.f32.partialorder %v1006, %v1025
        %vm1057 = vcmp.le.f32.partialorder %v1007, %v1027
        %vm1058 = vcmp.le.f32.partialorder %v1008, %v1029
        %vm1059 = vcmp.le.f32.partialorder %v1009, %v1031
        %vm1060 = vcmp.le.f32.partialorder %v1010, %v1033
        %vm1061 = vcmp.le.f32.partialorder %v1011, %v1035
        %vm1062 = vcmp.le.f32.partialorder %v1012, %v1037
        %vm1063 = vcmp.le.f32.partialorder %v1013, %v1039
        %vm1064 = vcmp.le.f32.partialorder %v1014, %v1041
        %vm1065 = vcmp.le.f32.partialorder %v1015, %v1043
        %vm1066 = vcmp.le.f32.partialorder %v1016, %v1045
        %vm1067 = vcmp.le.f32.partialorder %v1017, %v1047
        %vm1068 = vcmp.le.f32.partialorder %v1018, %v1049
        %vm1069 = vcmp.le.f32.partialorder %v1019, %v1051
        %v1070 = vsel %vm1054, %v1053, 2147483647
        %v1071 = vsel %vm1055, %v1053, 2147483647
        %v1072 = vsel %vm1056, %v1053, 2147483647
        %v1073 = vsel %vm1057, %v1053, 2147483647
        %v1074 = vsel %vm1058, %v1053, 2147483647
        %v1075 = vsel %vm1059, %v1053, 2147483647
        %v1076 = vsel %vm1060, %v1053, 2147483647
        %v1077 = vsel %vm1061, %v1053, 2147483647
        %v1078 = vsel %vm1062, %v1053, 2147483647
        %v1079 = vsel %vm1063, %v1053, 2147483647
        %v1080 = vsel %vm1064, %v1053, 2147483647
        %v1081 = vsel %vm1065, %v1053, 2147483647
        %v1082 = vsel %vm1066, %v1053, 2147483647
        %v1083 = vsel %vm1067, %v1053, 2147483647
        %v1084 = vsel %vm1068, %v1053, 2147483647
        %v1085 = vsel %vm1069, %v1053, 2147483647
        %v1086 = vand.u32 %v1070, 65535
        %v1087 = vshra.s32 %v1070, 16
        %v1088 = vcvt.s32.f32 %v1086
        %v1089 = vcvt.s32.f32 %v1087
        %1090 = vmin.xlane.f32.xlu0 %v1089
        %v1091 = vpop.xlane.xlu0 %1090
        %vm1092 = vcmp.eq.f32.partialorder %v1089, %v1091
        %v1093 = vsel %vm1092, %v1088, inf
        %1094 = vmin.xlane.f32.xlu0 %v1093
        %v1095 = vpop.xlane.xlu0 %1094
        %v1096 = vcvt.f32.s32 %v1095
        %v1097 = vcvt.f32.s32 %v1091
        %v1098 = vshll.u32 %v1097, 16
        %v1099 = vadd.s32 %v1098, %v1096
        %v1100 = vand.u32 %v1071, 65535
        %v1101 = vshra.s32 %v1071, 16
        %v1102 = vcvt.s32.f32 %v1100
        %v1103 = vcvt.s32.f32 %v1101
        %1104 = vmin.xlane.f32.xlu0 %v1103
        %v1105 = vpop.xlane.xlu0 %1104
        %vm1106 = vcmp.eq.f32.partialorder %v1103, %v1105
        %v1107 = vsel %vm1106, %v1102, inf
        %1108 = vmin.xlane.f32.xlu0 %v1107
        %v1109 = vpop.xlane.xlu0 %1108
        %v1110 = vcvt.f32.s32 %v1109
        %v1111 = vcvt.f32.s32 %v1105
        %v1112 = vshll.u32 %v1111, 16
        %v1113 = vadd.s32 %v1112, %v1110
        %v1114 = vand.u32 %v1072, 65535
        %v1115 = vshra.s32 %v1072, 16
        %v1116 = vcvt.s32.f32 %v1114
        %v1117 = vcvt.s32.f32 %v1115
        %1118 = vmin.xlane.f32.xlu0 %v1117
        %v1119 = vpop.xlane.xlu0 %1118
        %vm1120 = vcmp.eq.f32.partialorder %v1117, %v1119
        %v1121 = vsel %vm1120, %v1116, inf
        %1122 = vmin.xlane.f32.xlu0 %v1121
        %v1123 = vpop.xlane.xlu0 %1122
        %v1124 = vcvt.f32.s32 %v1123
        %v1125 = vcvt.f32.s32 %v1119
        %v1126 = vshll.u32 %v1125, 16
        %v1127 = vadd.s32 %v1126, %v1124
        %v1128 = vand.u32 %v1073, 65535
        %v1129 = vshra.s32 %v1073, 16
        %v1130 = vcvt.s32.f32 %v1128
        %v1131 = vcvt.s32.f32 %v1129
        %1132 = vmin.xlane.f32.xlu0 %v1131
        %v1133 = vpop.xlane.xlu0 %1132
        %vm1134 = vcmp.eq.f32.partialorder %v1131, %v1133
        %v1135 = vsel %vm1134, %v1130, inf
        %1136 = vmin.xlane.f32.xlu0 %v1135
        %v1137 = vpop.xlane.xlu0 %1136
        %v1138 = vcvt.f32.s32 %v1137
        %v1139 = vcvt.f32.s32 %v1133
        %v1140 = vshll.u32 %v1139, 16
        %v1141 = vadd.s32 %v1140, %v1138
        %v1142 = vand.u32 %v1074, 65535
        %v1143 = vshra.s32 %v1074, 16
        %v1144 = vcvt.s32.f32 %v1142
        %v1145 = vcvt.s32.f32 %v1143
        %1146 = vmin.xlane.f32.xlu0 %v1145
        %v1147 = vpop.xlane.xlu0 %1146
        %vm1148 = vcmp.eq.f32.partialorder %v1145, %v1147
        %v1149 = vsel %vm1148, %v1144, inf
        %1150 = vmin.xlane.f32.xlu0 %v1149
        %v1151 = vpop.xlane.xlu0 %1150
        %v1152 = vcvt.f32.s32 %v1151
        %v1153 = vcvt.f32.s32 %v1147
        %v1154 = vshll.u32 %v1153, 16
        %v1155 = vadd.s32 %v1154, %v1152
        %v1156 = vand.u32 %v1075, 65535
        %v1157 = vshra.s32 %v1075, 16
        %v1158 = vcvt.s32.f32 %v1156
        %v1159 = vcvt.s32.f32 %v1157
        %1160 = vmin.xlane.f32.xlu0 %v1159
        %v1161 = vpop.xlane.xlu0 %1160
        %vm1162 = vcmp.eq.f32.partialorder %v1159, %v1161
        %v1163 = vsel %vm1162, %v1158, inf
        %1164 = vmin.xlane.f32.xlu0 %v1163
        %v1165 = vpop.xlane.xlu0 %1164
        %v1166 = vcvt.f32.s32 %v1165
        %v1167 = vcvt.f32.s32 %v1161
        %v1168 = vshll.u32 %v1167, 16
        %v1169 = vadd.s32 %v1168, %v1166
        %v1170 = vand.u32 %v1076, 65535
        %v1171 = vshra.s32 %v1076, 16
        %v1172 = vcvt.s32.f32 %v1170
        %v1173 = vcvt.s32.f32 %v1171
        %1174 = vmin.xlane.f32.xlu0 %v1173
        %v1175 = vpop.xlane.xlu0 %1174
        %vm1176 = vcmp.eq.f32.partialorder %v1173, %v1175
        %v1177 = vsel %vm1176, %v1172, inf
        %1178 = vmin.xlane.f32.xlu0 %v1177
        %v1179 = vpop.xlane.xlu0 %1178
        %v1180 = vcvt.f32.s32 %v1179
        %v1181 = vcvt.f32.s32 %v1175
        %v1182 = vshll.u32 %v1181, 16
        %v1183 = vadd.s32 %v1182, %v1180
        %v1184 = vand.u32 %v1077, 65535
        %v1185 = vshra.s32 %v1077, 16
        %v1186 = vcvt.s32.f32 %v1184
        %v1187 = vcvt.s32.f32 %v1185
        %1188 = vmin.xlane.f32.xlu0 %v1187
        %v1189 = vpop.xlane.xlu0 %1188
        %vm1190 = vcmp.eq.f32.partialorder %v1187, %v1189
        %v1191 = vsel %vm1190, %v1186, inf
        %1192 = vmin.xlane.f32.xlu0 %v1191
        %v1193 = vpop.xlane.xlu0 %1192
        %v1194 = vcvt.f32.s32 %v1193
        %v1195 = vcvt.f32.s32 %v1189
        %v1196 = vshll.u32 %v1195, 16
        %v1197 = vadd.s32 %v1196, %v1194
        %v1198 = vand.u32 %v1078, 65535
        %v1199 = vshra.s32 %v1078, 16
        %v1200 = vcvt.s32.f32 %v1198
        %v1201 = vcvt.s32.f32 %v1199
        %1202 = vmin.xlane.f32.xlu0 %v1201
        %v1203 = vpop.xlane.xlu0 %1202
        %vm1204 = vcmp.eq.f32.partialorder %v1201, %v1203
        %v1205 = vsel %vm1204, %v1200, inf
        %1206 = vmin.xlane.f32.xlu0 %v1205
        %v1207 = vpop.xlane.xlu0 %1206
        %v1208 = vcvt.f32.s32 %v1207
        %v1209 = vcvt.f32.s32 %v1203
        %v1210 = vshll.u32 %v1209, 16
        %v1211 = vadd.s32 %v1210, %v1208
        %v1212 = vand.u32 %v1079, 65535
        %v1213 = vshra.s32 %v1079, 16
        %v1214 = vcvt.s32.f32 %v1212
        %v1215 = vcvt.s32.f32 %v1213
        %1216 = vmin.xlane.f32.xlu0 %v1215
        %v1217 = vpop.xlane.xlu0 %1216
        %vm1218 = vcmp.eq.f32.partialorder %v1215, %v1217
        %v1219 = vsel %vm1218, %v1214, inf
        %1220 = vmin.xlane.f32.xlu0 %v1219
        %v1221 = vpop.xlane.xlu0 %1220
        %v1222 = vcvt.f32.s32 %v1221
        %v1223 = vcvt.f32.s32 %v1217
        %v1224 = vshll.u32 %v1223, 16
        %v1225 = vadd.s32 %v1224, %v1222
        %v1226 = vand.u32 %v1080, 65535
        %v1227 = vshra.s32 %v1080, 16
        %v1228 = vcvt.s32.f32 %v1226
        %v1229 = vcvt.s32.f32 %v1227
        %1230 = vmin.xlane.f32.xlu0 %v1229
        %v1231 = vpop.xlane.xlu0 %1230
        %vm1232 = vcmp.eq.f32.partialorder %v1229, %v1231
        %v1233 = vsel %vm1232, %v1228, inf
        %1234 = vmin.xlane.f32.xlu0 %v1233
        %v1235 = vpop.xlane.xlu0 %1234
        %v1236 = vcvt.f32.s32 %v1235
        %v1237 = vcvt.f32.s32 %v1231
        %v1238 = vshll.u32 %v1237, 16
        %v1239 = vadd.s32 %v1238, %v1236
        %v1240 = vand.u32 %v1081, 65535
        %v1241 = vshra.s32 %v1081, 16
        %v1242 = vcvt.s32.f32 %v1240
        %v1243 = vcvt.s32.f32 %v1241
        %1244 = vmin.xlane.f32.xlu0 %v1243
        %v1245 = vpop.xlane.xlu0 %1244
        %vm1246 = vcmp.eq.f32.partialorder %v1243, %v1245
        %v1247 = vsel %vm1246, %v1242, inf
        %1248 = vmin.xlane.f32.xlu0 %v1247
        %v1249 = vpop.xlane.xlu0 %1248
        %v1250 = vcvt.f32.s32 %v1249
        %v1251 = vcvt.f32.s32 %v1245
        %v1252 = vshll.u32 %v1251, 16
        %v1253 = vadd.s32 %v1252, %v1250
        %v1254 = vand.u32 %v1082, 65535
        %v1255 = vshra.s32 %v1082, 16
        %v1256 = vcvt.s32.f32 %v1254
        %v1257 = vcvt.s32.f32 %v1255
        %1258 = vmin.xlane.f32.xlu0 %v1257
        %v1259 = vpop.xlane.xlu0 %1258
        %vm1260 = vcmp.eq.f32.partialorder %v1257, %v1259
        %v1261 = vsel %vm1260, %v1256, inf
        %1262 = vmin.xlane.f32.xlu0 %v1261
        %v1263 = vpop.xlane.xlu0 %1262
        %v1264 = vcvt.f32.s32 %v1263
        %v1265 = vcvt.f32.s32 %v1259
        %v1266 = vshll.u32 %v1265, 16
        %v1267 = vadd.s32 %v1266, %v1264
        %v1268 = vand.u32 %v1083, 65535
        %v1269 = vshra.s32 %v1083, 16
        %v1270 = vcvt.s32.f32 %v1268
        %v1271 = vcvt.s32.f32 %v1269
        %1272 = vmin.xlane.f32.xlu0 %v1271
        %v1273 = vpop.xlane.xlu0 %1272
        %vm1274 = vcmp.eq.f32.partialorder %v1271, %v1273
        %v1275 = vsel %vm1274, %v1270, inf
        %1276 = vmin.xlane.f32.xlu0 %v1275
        %v1277 = vpop.xlane.xlu0 %1276
        %v1278 = vcvt.f32.s32 %v1277
        %v1279 = vcvt.f32.s32 %v1273
        %v1280 = vshll.u32 %v1279, 16
        %v1281 = vadd.s32 %v1280, %v1278
        %v1282 = vand.u32 %v1084, 65535
        %v1283 = vshra.s32 %v1084, 16
        %v1284 = vcvt.s32.f32 %v1282
        %v1285 = vcvt.s32.f32 %v1283
        %1286 = vmin.xlane.f32.xlu0 %v1285
        %v1287 = vpop.xlane.xlu0 %1286
        %vm1288 = vcmp.eq.f32.partialorder %v1285, %v1287
        %v1289 = vsel %vm1288, %v1284, inf
        %1290 = vmin.xlane.f32.xlu0 %v1289
        %v1291 = vpop.xlane.xlu0 %1290
        %v1292 = vcvt.f32.s32 %v1291
        %v1293 = vcvt.f32.s32 %v1287
        %v1294 = vshll.u32 %v1293, 16
        %v1295 = vadd.s32 %v1294, %v1292
        %v1296 = vand.u32 %v1085, 65535
        %v1297 = vshra.s32 %v1085, 16
        %v1298 = vcvt.s32.f32 %v1296
        %v1299 = vcvt.s32.f32 %v1297
        %1300 = vmin.xlane.f32.xlu0 %v1299
        %v1301 = vpop.xlane.xlu0 %1300
        %vm1302 = vcmp.eq.f32.partialorder %v1299, %v1301
        %v1303 = vsel %vm1302, %v1298, inf
        %1304 = vmin.xlane.f32.xlu0 %v1303
        %v1305 = vpop.xlane.xlu0 %1304
        %v1306 = vcvt.f32.s32 %v1305
        %v1307 = vcvt.f32.s32 %v1301
        %v1308 = vshll.u32 %v1307, 16
        %v1309 = vadd.s32 %v1308, %v1306
        %v1310 = vstv %s822
        %v1311 = vadd.s32 %v1099, %v1310
        %v1312 = vadd.s32 %v1113, %v1310
        %v1313 = vadd.s32 %v1127, %v1310
        %v1314 = vadd.s32 %v1141, %v1310
        %v1315 = vadd.s32 %v1155, %v1310
        %v1316 = vadd.s32 %v1169, %v1310
        %v1317 = vadd.s32 %v1183, %v1310
        %v1318 = vadd.s32 %v1197, %v1310
        %v1319 = vadd.s32 %v1211, %v1310
        %v1320 = vadd.s32 %v1225, %v1310
        %v1321 = vadd.s32 %v1239, %v1310
        %v1322 = vadd.s32 %v1253, %v1310
        %v1323 = vadd.s32 %v1267, %v1310
        %v1324 = vadd.s32 %v1281, %v1310
        %v1325 = vadd.s32 %v1295, %v1310
        %v1326 = vadd.s32 %v1309, %v1310
        %vm1327 = vcmp.lt.f32.partialorder %v1021, %v790
        %vm1328 = vcmp.lt.f32.partialorder %v1023, %v791
        %vm1329 = vcmp.lt.f32.partialorder %v1025, %v792
        %vm1330 = vcmp.lt.f32.partialorder %v1027, %v793
        %vm1331 = vcmp.lt.f32.partialorder %v1029, %v794
        %vm1332 = vcmp.lt.f32.partialorder %v1031, %v795
        %vm1333 = vcmp.lt.f32.partialorder %v1033, %v796
        %vm1334 = vcmp.lt.f32.partialorder %v1035, %v797
        %vm1335 = vcmp.lt.f32.partialorder %v1037, %v798
        %vm1336 = vcmp.lt.f32.partialorder %v1039, %v799
        %vm1337 = vcmp.lt.f32.partialorder %v1041, %v800
        %vm1338 = vcmp.lt.f32.partialorder %v1043, %v801
        %vm1339 = vcmp.lt.f32.partialorder %v1045, %v802
        %vm1340 = vcmp.lt.f32.partialorder %v1047, %v803
        %vm1341 = vcmp.lt.f32.partialorder %v1049, %v804
        %vm1342 = vcmp.lt.f32.partialorder %v1051, %v805
        %v1343 = vsel %vm1327, %v1021, %v790
        %v1344 = vsel %vm1328, %v1023, %v791
        %v1345 = vsel %vm1329, %v1025, %v792
        %v1346 = vsel %vm1330, %v1027, %v793
        %v1347 = vsel %vm1331, %v1029, %v794
        %v1348 = vsel %vm1332, %v1031, %v795
        %v1349 = vsel %vm1333, %v1033, %v796
        %v1350 = vsel %vm1334, %v1035, %v797
        %v1351 = vsel %vm1335, %v1037, %v798
        %v1352 = vsel %vm1336, %v1039, %v799
        %v1353 = vsel %vm1337, %v1041, %v800
        %v1354 = vsel %vm1338, %v1043, %v801
        %v1355 = vsel %vm1339, %v1045, %v802
        %v1356 = vsel %vm1340, %v1047, %v803
        %v1357 = vsel %vm1341, %v1049, %v804
        %v1358 = vsel %vm1342, %v1051, %v805
        %v1359 = vsel %vm1327, %v1311, %v806
        %v1360 = vsel %vm1328, %v1312, %v807
        %v1361 = vsel %vm1329, %v1313, %v808
        %v1362 = vsel %vm1330, %v1314, %v809
        %v1363 = vsel %vm1331, %v1315, %v810
        %v1364 = vsel %vm1332, %v1316, %v811
        %v1365 = vsel %vm1333, %v1317, %v812
        %v1366 = vsel %vm1334, %v1318, %v813
        %v1367 = vsel %vm1335, %v1319, %v814
        %v1368 = vsel %vm1336, %v1320, %v815
        %v1369 = vsel %vm1337, %v1321, %v816
        %v1370 = vsel %vm1338, %v1322, %v817
        %v1371 = vsel %vm1339, %v1323, %v818
        %v1372 = vsel %vm1340, %v1324, %v819
        %v1373 = vsel %vm1341, %v1325, %v820
        %v1374 = vsel %vm1342, %v1326, %v821
        %v1375 = vld [vmem:[%s371 + $0x1] sm:$0x1]
        %v1376 = vld [vmem:[%s325 + $0x4] sm:$0xf]
        %v1377 = vld [vmem:[%s325 + $0xc] sm:$0xf]
        %v1378 = vld [vmem:[%s325 + $0x14] sm:$0xf]
        %v1379 = vld [vmem:[%s325 + $0x1c] sm:$0xf]
        %v1380 = vld [vmem:[%s325 + $0x24] sm:$0xf]
        %v1381 = vld [vmem:[%s325 + $0x2c] sm:$0xf]
        %v1382 = vld [vmem:[%s325 + $0x34] sm:$0xf]
        %v1383 = vld [vmem:[%s325 + $0x3c] sm:$0xf]
        %v1384 = vld [vmem:[%s325 + $0x44] sm:$0xf]
        %v1385 = vld [vmem:[%s325 + $0x4c] sm:$0xf]
        %v1386 = vld [vmem:[%s325 + $0x54] sm:$0xf]
        %v1387 = vld [vmem:[%s325 + $0x5c] sm:$0xf]
        %v1388 = vld [vmem:[%s325 + $0x64] sm:$0xf]
        %v1389 = vld [vmem:[%s325 + $0x6c] sm:$0xf]
        %v1390 = vld [vmem:[%s325 + $0x74] sm:$0xf]
        %v1391 = vld [vmem:[%s325 + $0x7c] sm:$0xf]
        %v1408 = vunpack.c.l.b16 %v1376
        %v1409 = vunpack.c.l.b16 %v1377
        %v1410 = vunpack.c.l.b16 %v1378
        %v1411 = vunpack.c.l.b16 %v1379
        %v1412 = vunpack.c.l.b16 %v1380
        %v1413 = vunpack.c.l.b16 %v1381
        %v1414 = vunpack.c.l.b16 %v1382
        %v1415 = vunpack.c.l.b16 %v1383
        %v1416 = vunpack.c.l.b16 %v1384
        %v1417 = vunpack.c.l.b16 %v1385
        %v1418 = vunpack.c.l.b16 %v1386
        %v1419 = vunpack.c.l.b16 %v1387
        %v1420 = vunpack.c.l.b16 %v1388
        %v1421 = vunpack.c.l.b16 %v1389
        %v1422 = vunpack.c.l.b16 %v1390
        %v1423 = vunpack.c.l.b16 %v1391
        %v1424 = vpack.c.b16 %v1409, %v1408
        %v1425 = vpack.c.b16 %v1411, %v1410
        %v1426 = vpack.c.b16 %v1413, %v1412
        %v1427 = vpack.c.b16 %v1415, %v1414
        %v1428 = vpack.c.b16 %v1417, %v1416
        %v1429 = vpack.c.b16 %v1419, %v1418
        %v1430 = vpack.c.b16 %v1421, %v1420
        %v1431 = vpack.c.b16 %v1423, %v1422
        %1440 = vmatpush.bf16.msra.mxu0 %v1431
        %1441 = vmatpush.bf16.msra.mxu0 %v1430
        %1442 = vmatpush.bf16.msra.mxu0 %v1429
        %1443 = vmatpush.bf16.msra.mxu0 %v1428
        %1444 = vmatpush.bf16.msra.mxu0 %v1427
        %1445 = vmatpush.bf16.msra.mxu0 %v1426
        %1446 = vmatpush.bf16.msra.mxu0 %v1425
        %1447 = vmatpush.bf16.msra.mxu0 %v1424
        %1448 = vmatmul.bf16.gmra.mxu0 %v872
        %v1449 = vpop.f32.mrf.mxu0
        %v1450 = vadd.f32 0.0, %v1449
        %v1451 = vpop.f32.mrf.mxu0
        %v1452 = vadd.f32 0.0, %v1451
        %1453 = vmatmul.bf16.gmra.mxu0 %v873
        %v1454 = vpop.f32.mrf.mxu0
        %v1455 = vadd.f32 0.0, %v1454
        %v1456 = vpop.f32.mrf.mxu0
        %v1457 = vadd.f32 0.0, %v1456
        %1458 = vmatmul.bf16.gmra.mxu0 %v874
        %v1459 = vpop.f32.mrf.mxu0
        %v1460 = vadd.f32 0.0, %v1459
        %v1461 = vpop.f32.mrf.mxu0
        %v1462 = vadd.f32 0.0, %v1461
        %1463 = vmatmul.bf16.gmra.mxu0 %v875
        %v1464 = vpop.f32.mrf.mxu0
        %v1465 = vadd.f32 0.0, %v1464
        %v1466 = vpop.f32.mrf.mxu0
        %v1467 = vadd.f32 0.0, %v1466
        %1468 = vmatmul.bf16.gmra.mxu0 %v876
        %v1469 = vpop.f32.mrf.mxu0
        %v1470 = vadd.f32 0.0, %v1469
        %v1471 = vpop.f32.mrf.mxu0
        %v1472 = vadd.f32 0.0, %v1471
        %1473 = vmatmul.bf16.gmra.mxu0 %v877
        %v1474 = vpop.f32.mrf.mxu0
        %v1475 = vadd.f32 0.0, %v1474
        %v1476 = vpop.f32.mrf.mxu0
        %v1477 = vadd.f32 0.0, %v1476
        %1478 = vmatmul.bf16.gmra.mxu0 %v878
        %v1479 = vpop.f32.mrf.mxu0
        %v1480 = vadd.f32 0.0, %v1479
        %v1481 = vpop.f32.mrf.mxu0
        %v1482 = vadd.f32 0.0, %v1481
        %1483 = vmatmul.bf16.gmra.mxu0 %v879
        %v1484 = vpop.f32.mrf.mxu0
        %v1485 = vadd.f32 0.0, %v1484
        %v1486 = vpop.f32.mrf.mxu0
        %v1487 = vadd.f32 0.0, %v1486
        %1488 = vdwg.mxu0
        %v1489 = vmul.f32 %v1450, 2.0
        %v1490 = vmul.f32 %v1452, 2.0
        %v1491 = vmul.f32 %v1455, 2.0
        %v1492 = vmul.f32 %v1457, 2.0
        %v1493 = vmul.f32 %v1460, 2.0
        %v1494 = vmul.f32 %v1462, 2.0
        %v1495 = vmul.f32 %v1465, 2.0
        %v1496 = vmul.f32 %v1467, 2.0
        %v1497 = vmul.f32 %v1470, 2.0
        %v1498 = vmul.f32 %v1472, 2.0
        %v1499 = vmul.f32 %v1475, 2.0
        %v1500 = vmul.f32 %v1477, 2.0
        %v1501 = vmul.f32 %v1480, 2.0
        %v1502 = vmul.f32 %v1482, 2.0
        %v1503 = vmul.f32 %v1485, 2.0
        %v1504 = vmul.f32 %v1487, 2.0
        %v1506 = vperm.slane %v1375, 0
        %v1508 = vsub.f32 %v1506, %v1489
        %v1509 = vsub.f32 %v1506, %v1490
        %v1510 = vsub.f32 %v1506, %v1491
        %v1511 = vsub.f32 %v1506, %v1492
        %v1512 = vsub.f32 %v1506, %v1493
        %v1513 = vsub.f32 %v1506, %v1494
        %v1514 = vsub.f32 %v1506, %v1495
        %v1515 = vsub.f32 %v1506, %v1496
        %v1516 = vsub.f32 %v1506, %v1497
        %v1517 = vsub.f32 %v1506, %v1498
        %v1518 = vsub.f32 %v1506, %v1499
        %v1519 = vsub.f32 %v1506, %v1500
        %v1520 = vsub.f32 %v1506, %v1501
        %v1521 = vsub.f32 %v1506, %v1502
        %v1522 = vsub.f32 %v1506, %v1503
        %v1523 = vsub.f32 %v1506, %v1504
        %1524 = vmin.xlane.f32.xlu0 %v1508
        %v1525 = vpop.xlane.xlu0 %1524
        %1526 = vmin.xlane.f32.xlu0 %v1509
        %v1527 = vpop.xlane.xlu0 %1526
        %1528 = vmin.xlane.f32.xlu0 %v1510
        %v1529 = vpop.xlane.xlu0 %1528
        %1530 = vmin.xlane.f32.xlu0 %v1511
        %v1531 = vpop.xlane.xlu0 %1530
        %1532 = vmin.xlane.f32.xlu0 %v1512
        %v1533 = vpop.xlane.xlu0 %1532
        %1534 = vmin.xlane.f32.xlu0 %v1513
        %v1535 = vpop.xlane.xlu0 %1534
        %1536 = vmin.xlane.f32.xlu0 %v1514
        %v1537 = vpop.xlane.xlu0 %1536
        %1538 = vmin.xlane.f32.xlu0 %v1515
        %v1539 = vpop.xlane.xlu0 %1538
        %1540 = vmin.xlane.f32.xlu0 %v1516
        %v1541 = vpop.xlane.xlu0 %1540
        %1542 = vmin.xlane.f32.xlu0 %v1517
        %v1543 = vpop.xlane.xlu0 %1542
        %1544 = vmin.xlane.f32.xlu0 %v1518
        %v1545 = vpop.xlane.xlu0 %1544
        %1546 = vmin.xlane.f32.xlu0 %v1519
        %v1547 = vpop.xlane.xlu0 %1546
        %1548 = vmin.xlane.f32.xlu0 %v1520
        %v1549 = vpop.xlane.xlu0 %1548
        %1550 = vmin.xlane.f32.xlu0 %v1521
        %v1551 = vpop.xlane.xlu0 %1550
        %1552 = vmin.xlane.f32.xlu0 %v1522
        %v1553 = vpop.xlane.xlu0 %1552
        %1554 = vmin.xlane.f32.xlu0 %v1523
        %v1555 = vpop.xlane.xlu0 %1554
        %vm1556 = vcmp.le.f32.partialorder %v1508, %v1525
        %vm1557 = vcmp.le.f32.partialorder %v1509, %v1527
        %vm1558 = vcmp.le.f32.partialorder %v1510, %v1529
        %vm1559 = vcmp.le.f32.partialorder %v1511, %v1531
        %vm1560 = vcmp.le.f32.partialorder %v1512, %v1533
        %vm1561 = vcmp.le.f32.partialorder %v1513, %v1535
        %vm1562 = vcmp.le.f32.partialorder %v1514, %v1537
        %vm1563 = vcmp.le.f32.partialorder %v1515, %v1539
        %vm1564 = vcmp.le.f32.partialorder %v1516, %v1541
        %vm1565 = vcmp.le.f32.partialorder %v1517, %v1543
        %vm1566 = vcmp.le.f32.partialorder %v1518, %v1545
        %vm1567 = vcmp.le.f32.partialorder %v1519, %v1547
        %vm1568 = vcmp.le.f32.partialorder %v1520, %v1549
        %vm1569 = vcmp.le.f32.partialorder %v1521, %v1551
        %vm1570 = vcmp.le.f32.partialorder %v1522, %v1553
        %vm1571 = vcmp.le.f32.partialorder %v1523, %v1555
        %v1572 = vsel %vm1556, %v1053, 2147483647
        %v1573 = vsel %vm1557, %v1053, 2147483647
        %v1574 = vsel %vm1558, %v1053, 2147483647
        %v1575 = vsel %vm1559, %v1053, 2147483647
        %v1576 = vsel %vm1560, %v1053, 2147483647
        %v1577 = vsel %vm1561, %v1053, 2147483647
        %v1578 = vsel %vm1562, %v1053, 2147483647
        %v1579 = vsel %vm1563, %v1053, 2147483647
        %v1580 = vsel %vm1564, %v1053, 2147483647
        %v1581 = vsel %vm1565, %v1053, 2147483647
        %v1582 = vsel %vm1566, %v1053, 2147483647
        %v1583 = vsel %vm1567, %v1053, 2147483647
        %v1584 = vsel %vm1568, %v1053, 2147483647
        %v1585 = vsel %vm1569, %v1053, 2147483647
        %v1586 = vsel %vm1570, %v1053, 2147483647
        %v1587 = vsel %vm1571, %v1053, 2147483647
        %v1588 = vand.u32 %v1572, 65535
        %v1589 = vshra.s32 %v1572, 16
        %v1590 = vcvt.s32.f32 %v1588
        %v1591 = vcvt.s32.f32 %v1589
        %1592 = vmin.xlane.f32.xlu0 %v1591
        %v1593 = vpop.xlane.xlu0 %1592
        %vm1594 = vcmp.eq.f32.partialorder %v1591, %v1593
        %v1595 = vsel %vm1594, %v1590, inf
        %1596 = vmin.xlane.f32.xlu0 %v1595
        %v1597 = vpop.xlane.xlu0 %1596
        %v1598 = vcvt.f32.s32 %v1597
        %v1599 = vcvt.f32.s32 %v1593
        %v1600 = vshll.u32 %v1599, 16
        %v1601 = vadd.s32 %v1600, %v1598
        %v1602 = vand.u32 %v1573, 65535
        %v1603 = vshra.s32 %v1573, 16
        %v1604 = vcvt.s32.f32 %v1602
        %v1605 = vcvt.s32.f32 %v1603
        %1606 = vmin.xlane.f32.xlu0 %v1605
        %v1607 = vpop.xlane.xlu0 %1606
        %vm1608 = vcmp.eq.f32.partialorder %v1605, %v1607
        %v1609 = vsel %vm1608, %v1604, inf
        %1610 = vmin.xlane.f32.xlu0 %v1609
        %v1611 = vpop.xlane.xlu0 %1610
        %v1612 = vcvt.f32.s32 %v1611
        %v1613 = vcvt.f32.s32 %v1607
        %v1614 = vshll.u32 %v1613, 16
        %v1615 = vadd.s32 %v1614, %v1612
        %v1616 = vand.u32 %v1574, 65535
        %v1617 = vshra.s32 %v1574, 16
        %v1618 = vcvt.s32.f32 %v1616
        %v1619 = vcvt.s32.f32 %v1617
        %1620 = vmin.xlane.f32.xlu0 %v1619
        %v1621 = vpop.xlane.xlu0 %1620
        %vm1622 = vcmp.eq.f32.partialorder %v1619, %v1621
        %v1623 = vsel %vm1622, %v1618, inf
        %1624 = vmin.xlane.f32.xlu0 %v1623
        %v1625 = vpop.xlane.xlu0 %1624
        %v1626 = vcvt.f32.s32 %v1625
        %v1627 = vcvt.f32.s32 %v1621
        %v1628 = vshll.u32 %v1627, 16
        %v1629 = vadd.s32 %v1628, %v1626
        %v1630 = vand.u32 %v1575, 65535
        %v1631 = vshra.s32 %v1575, 16
        %v1632 = vcvt.s32.f32 %v1630
        %v1633 = vcvt.s32.f32 %v1631
        %1634 = vmin.xlane.f32.xlu0 %v1633
        %v1635 = vpop.xlane.xlu0 %1634
        %vm1636 = vcmp.eq.f32.partialorder %v1633, %v1635
        %v1637 = vsel %vm1636, %v1632, inf
        %1638 = vmin.xlane.f32.xlu0 %v1637
        %v1639 = vpop.xlane.xlu0 %1638
        %v1640 = vcvt.f32.s32 %v1639
        %v1641 = vcvt.f32.s32 %v1635
        %v1642 = vshll.u32 %v1641, 16
        %v1643 = vadd.s32 %v1642, %v1640
        %v1644 = vand.u32 %v1576, 65535
        %v1645 = vshra.s32 %v1576, 16
        %v1646 = vcvt.s32.f32 %v1644
        %v1647 = vcvt.s32.f32 %v1645
        %1648 = vmin.xlane.f32.xlu0 %v1647
        %v1649 = vpop.xlane.xlu0 %1648
        %vm1650 = vcmp.eq.f32.partialorder %v1647, %v1649
        %v1651 = vsel %vm1650, %v1646, inf
        %1652 = vmin.xlane.f32.xlu0 %v1651
        %v1653 = vpop.xlane.xlu0 %1652
        %v1654 = vcvt.f32.s32 %v1653
        %v1655 = vcvt.f32.s32 %v1649
        %v1656 = vshll.u32 %v1655, 16
        %v1657 = vadd.s32 %v1656, %v1654
        %v1658 = vand.u32 %v1577, 65535
        %v1659 = vshra.s32 %v1577, 16
        %v1660 = vcvt.s32.f32 %v1658
        %v1661 = vcvt.s32.f32 %v1659
        %1662 = vmin.xlane.f32.xlu0 %v1661
        %v1663 = vpop.xlane.xlu0 %1662
        %vm1664 = vcmp.eq.f32.partialorder %v1661, %v1663
        %v1665 = vsel %vm1664, %v1660, inf
        %1666 = vmin.xlane.f32.xlu0 %v1665
        %v1667 = vpop.xlane.xlu0 %1666
        %v1668 = vcvt.f32.s32 %v1667
        %v1669 = vcvt.f32.s32 %v1663
        %v1670 = vshll.u32 %v1669, 16
        %v1671 = vadd.s32 %v1670, %v1668
        %v1672 = vand.u32 %v1578, 65535
        %v1673 = vshra.s32 %v1578, 16
        %v1674 = vcvt.s32.f32 %v1672
        %v1675 = vcvt.s32.f32 %v1673
        %1676 = vmin.xlane.f32.xlu0 %v1675
        %v1677 = vpop.xlane.xlu0 %1676
        %vm1678 = vcmp.eq.f32.partialorder %v1675, %v1677
        %v1679 = vsel %vm1678, %v1674, inf
        %1680 = vmin.xlane.f32.xlu0 %v1679
        %v1681 = vpop.xlane.xlu0 %1680
        %v1682 = vcvt.f32.s32 %v1681
        %v1683 = vcvt.f32.s32 %v1677
        %v1684 = vshll.u32 %v1683, 16
        %v1685 = vadd.s32 %v1684, %v1682
        %v1686 = vand.u32 %v1579, 65535
        %v1687 = vshra.s32 %v1579, 16
        %v1688 = vcvt.s32.f32 %v1686
        %v1689 = vcvt.s32.f32 %v1687
        %1690 = vmin.xlane.f32.xlu0 %v1689
        %v1691 = vpop.xlane.xlu0 %1690
        %vm1692 = vcmp.eq.f32.partialorder %v1689, %v1691
        %v1693 = vsel %vm1692, %v1688, inf
        %1694 = vmin.xlane.f32.xlu0 %v1693
        %v1695 = vpop.xlane.xlu0 %1694
        %v1696 = vcvt.f32.s32 %v1695
        %v1697 = vcvt.f32.s32 %v1691
        %v1698 = vshll.u32 %v1697, 16
        %v1699 = vadd.s32 %v1698, %v1696
        %v1700 = vand.u32 %v1580, 65535
        %v1701 = vshra.s32 %v1580, 16
        %v1702 = vcvt.s32.f32 %v1700
        %v1703 = vcvt.s32.f32 %v1701
        %1704 = vmin.xlane.f32.xlu0 %v1703
        %v1705 = vpop.xlane.xlu0 %1704
        %vm1706 = vcmp.eq.f32.partialorder %v1703, %v1705
        %v1707 = vsel %vm1706, %v1702, inf
        %1708 = vmin.xlane.f32.xlu0 %v1707
        %v1709 = vpop.xlane.xlu0 %1708
        %v1710 = vcvt.f32.s32 %v1709
        %v1711 = vcvt.f32.s32 %v1705
        %v1712 = vshll.u32 %v1711, 16
        %v1713 = vadd.s32 %v1712, %v1710
        %v1714 = vand.u32 %v1581, 65535
        %v1715 = vshra.s32 %v1581, 16
        %v1716 = vcvt.s32.f32 %v1714
        %v1717 = vcvt.s32.f32 %v1715
        %1718 = vmin.xlane.f32.xlu0 %v1717
        %v1719 = vpop.xlane.xlu0 %1718
        %vm1720 = vcmp.eq.f32.partialorder %v1717, %v1719
        %v1721 = vsel %vm1720, %v1716, inf
        %1722 = vmin.xlane.f32.xlu0 %v1721
        %v1723 = vpop.xlane.xlu0 %1722
        %v1724 = vcvt.f32.s32 %v1723
        %v1725 = vcvt.f32.s32 %v1719
        %v1726 = vshll.u32 %v1725, 16
        %v1727 = vadd.s32 %v1726, %v1724
        %v1728 = vand.u32 %v1582, 65535
        %v1729 = vshra.s32 %v1582, 16
        %v1730 = vcvt.s32.f32 %v1728
        %v1731 = vcvt.s32.f32 %v1729
        %1732 = vmin.xlane.f32.xlu0 %v1731
        %v1733 = vpop.xlane.xlu0 %1732
        %vm1734 = vcmp.eq.f32.partialorder %v1731, %v1733
        %v1735 = vsel %vm1734, %v1730, inf
        %1736 = vmin.xlane.f32.xlu0 %v1735
        %v1737 = vpop.xlane.xlu0 %1736
        %v1738 = vcvt.f32.s32 %v1737
        %v1739 = vcvt.f32.s32 %v1733
        %v1740 = vshll.u32 %v1739, 16
        %v1741 = vadd.s32 %v1740, %v1738
        %v1742 = vand.u32 %v1583, 65535
        %v1743 = vshra.s32 %v1583, 16
        %v1744 = vcvt.s32.f32 %v1742
        %v1745 = vcvt.s32.f32 %v1743
        %1746 = vmin.xlane.f32.xlu0 %v1745
        %v1747 = vpop.xlane.xlu0 %1746
        %vm1748 = vcmp.eq.f32.partialorder %v1745, %v1747
        %v1749 = vsel %vm1748, %v1744, inf
        %1750 = vmin.xlane.f32.xlu0 %v1749
        %v1751 = vpop.xlane.xlu0 %1750
        %v1752 = vcvt.f32.s32 %v1751
        %v1753 = vcvt.f32.s32 %v1747
        %v1754 = vshll.u32 %v1753, 16
        %v1755 = vadd.s32 %v1754, %v1752
        %v1756 = vand.u32 %v1584, 65535
        %v1757 = vshra.s32 %v1584, 16
        %v1758 = vcvt.s32.f32 %v1756
        %v1759 = vcvt.s32.f32 %v1757
        %1760 = vmin.xlane.f32.xlu0 %v1759
        %v1761 = vpop.xlane.xlu0 %1760
        %vm1762 = vcmp.eq.f32.partialorder %v1759, %v1761
        %v1763 = vsel %vm1762, %v1758, inf
        %1764 = vmin.xlane.f32.xlu0 %v1763
        %v1765 = vpop.xlane.xlu0 %1764
        %v1766 = vcvt.f32.s32 %v1765
        %v1767 = vcvt.f32.s32 %v1761
        %v1768 = vshll.u32 %v1767, 16
        %v1769 = vadd.s32 %v1768, %v1766
        %v1770 = vand.u32 %v1585, 65535
        %v1771 = vshra.s32 %v1585, 16
        %v1772 = vcvt.s32.f32 %v1770
        %v1773 = vcvt.s32.f32 %v1771
        %1774 = vmin.xlane.f32.xlu0 %v1773
        %v1775 = vpop.xlane.xlu0 %1774
        %vm1776 = vcmp.eq.f32.partialorder %v1773, %v1775
        %v1777 = vsel %vm1776, %v1772, inf
        %1778 = vmin.xlane.f32.xlu0 %v1777
        %v1779 = vpop.xlane.xlu0 %1778
        %v1780 = vcvt.f32.s32 %v1779
        %v1781 = vcvt.f32.s32 %v1775
        %v1782 = vshll.u32 %v1781, 16
        %v1783 = vadd.s32 %v1782, %v1780
        %v1784 = vand.u32 %v1586, 65535
        %v1785 = vshra.s32 %v1586, 16
        %v1786 = vcvt.s32.f32 %v1784
        %v1787 = vcvt.s32.f32 %v1785
        %1788 = vmin.xlane.f32.xlu0 %v1787
        %v1789 = vpop.xlane.xlu0 %1788
        %vm1790 = vcmp.eq.f32.partialorder %v1787, %v1789
        %v1791 = vsel %vm1790, %v1786, inf
        %1792 = vmin.xlane.f32.xlu0 %v1791
        %v1793 = vpop.xlane.xlu0 %1792
        %v1794 = vcvt.f32.s32 %v1793
        %v1795 = vcvt.f32.s32 %v1789
        %v1796 = vshll.u32 %v1795, 16
        %v1797 = vadd.s32 %v1796, %v1794
        %v1798 = vand.u32 %v1587, 65535
        %v1799 = vshra.s32 %v1587, 16
        %v1800 = vcvt.s32.f32 %v1798
        %v1801 = vcvt.s32.f32 %v1799
        %1802 = vmin.xlane.f32.xlu0 %v1801
        %v1803 = vpop.xlane.xlu0 %1802
        %vm1804 = vcmp.eq.f32.partialorder %v1801, %v1803
        %v1805 = vsel %vm1804, %v1800, inf
        %1806 = vmin.xlane.f32.xlu0 %v1805
        %v1807 = vpop.xlane.xlu0 %1806
        %v1808 = vcvt.f32.s32 %v1807
        %v1809 = vcvt.f32.s32 %v1803
        %v1810 = vshll.u32 %v1809, 16
        %v1811 = vadd.s32 %v1810, %v1808
        %s1812 = sadd.s32 %s822, 128
        %v1813 = vstv %s1812
        %v1814 = vadd.s32 %v1601, %v1813
        %v1815 = vadd.s32 %v1615, %v1813
        %v1816 = vadd.s32 %v1629, %v1813
        %v1817 = vadd.s32 %v1643, %v1813
        %v1818 = vadd.s32 %v1657, %v1813
        %v1819 = vadd.s32 %v1671, %v1813
        %v1820 = vadd.s32 %v1685, %v1813
        %v1821 = vadd.s32 %v1699, %v1813
        %v1822 = vadd.s32 %v1713, %v1813
        %v1823 = vadd.s32 %v1727, %v1813
        %v1824 = vadd.s32 %v1741, %v1813
        %v1825 = vadd.s32 %v1755, %v1813
        %v1826 = vadd.s32 %v1769, %v1813
        %v1827 = vadd.s32 %v1783, %v1813
        %v1828 = vadd.s32 %v1797, %v1813
        %v1829 = vadd.s32 %v1811, %v1813
        %vm1830 = vcmp.lt.f32.partialorder %v1525, %v1343
        %vm1831 = vcmp.lt.f32.partialorder %v1527, %v1344
        %vm1832 = vcmp.lt.f32.partialorder %v1529, %v1345
        %vm1833 = vcmp.lt.f32.partialorder %v1531, %v1346
        %vm1834 = vcmp.lt.f32.partialorder %v1533, %v1347
        %vm1835 = vcmp.lt.f32.partialorder %v1535, %v1348
        %vm1836 = vcmp.lt.f32.partialorder %v1537, %v1349
        %vm1837 = vcmp.lt.f32.partialorder %v1539, %v1350
        %vm1838 = vcmp.lt.f32.partialorder %v1541, %v1351
        %vm1839 = vcmp.lt.f32.partialorder %v1543, %v1352
        %vm1840 = vcmp.lt.f32.partialorder %v1545, %v1353
        %vm1841 = vcmp.lt.f32.partialorder %v1547, %v1354
        %vm1842 = vcmp.lt.f32.partialorder %v1549, %v1355
        %vm1843 = vcmp.lt.f32.partialorder %v1551, %v1356
        %vm1844 = vcmp.lt.f32.partialorder %v1553, %v1357
        %vm1845 = vcmp.lt.f32.partialorder %v1555, %v1358
        %v1846 = vsel %vm1830, %v1525, %v1343
        %v1847 = vsel %vm1831, %v1527, %v1344
        %v1848 = vsel %vm1832, %v1529, %v1345
        %v1849 = vsel %vm1833, %v1531, %v1346
        %v1850 = vsel %vm1834, %v1533, %v1347
        %v1851 = vsel %vm1835, %v1535, %v1348
        %v1852 = vsel %vm1836, %v1537, %v1349
        %v1853 = vsel %vm1837, %v1539, %v1350
        %v1854 = vsel %vm1838, %v1541, %v1351
        %v1855 = vsel %vm1839, %v1543, %v1352
        %v1856 = vsel %vm1840, %v1545, %v1353
        %v1857 = vsel %vm1841, %v1547, %v1354
        %v1858 = vsel %vm1842, %v1549, %v1355
        %v1859 = vsel %vm1843, %v1551, %v1356
        %v1860 = vsel %vm1844, %v1553, %v1357
        %v1861 = vsel %vm1845, %v1555, %v1358
        %v1862 = vsel %vm1830, %v1814, %v1359
        %v1863 = vsel %vm1831, %v1815, %v1360
        %v1864 = vsel %vm1832, %v1816, %v1361
        %v1865 = vsel %vm1833, %v1817, %v1362
        %v1866 = vsel %vm1834, %v1818, %v1363
        %v1867 = vsel %vm1835, %v1819, %v1364
        %v1868 = vsel %vm1836, %v1820, %v1365
        %v1869 = vsel %vm1837, %v1821, %v1366
        %v1870 = vsel %vm1838, %v1822, %v1367
        %v1871 = vsel %vm1839, %v1823, %v1368
        %v1872 = vsel %vm1840, %v1824, %v1369
        %v1873 = vsel %vm1841, %v1825, %v1370
        %v1874 = vsel %vm1842, %v1826, %v1371
        %v1875 = vsel %vm1843, %v1827, %v1372
        %v1876 = vsel %vm1844, %v1828, %v1373
        %v1877 = vsel %vm1845, %v1829, %v1374
        %vm1878 = vcmask 7168
        %1879 = vst.msk [vmem:[#allocation3] sm:$0xff] %vm1878, %v1846
        %1880 = vst.msk [vmem:[#allocation3 + $0x8] sm:$0xff] %vm1878, %v1847
        %1881 = vst.msk [vmem:[#allocation3 + $0x10] sm:$0xff] %vm1878, %v1848
        %1882 = vst.msk [vmem:[#allocation3 + $0x18] sm:$0xff] %vm1878, %v1849
        %1883 = vst.msk [vmem:[#allocation3 + $0x20] sm:$0xff] %vm1878, %v1850
        %1884 = vst.msk [vmem:[#allocation3 + $0x28] sm:$0xff] %vm1878, %v1851
        %1885 = vst.msk [vmem:[#allocation3 + $0x30] sm:$0xff] %vm1878, %v1852
        %1886 = vst.msk [vmem:[#allocation3 + $0x38] sm:$0xff] %vm1878, %v1853
        %1887 = vst.msk [vmem:[#allocation3 + $0x40] sm:$0xff] %vm1878, %v1854
        %1888 = vst.msk [vmem:[#allocation3 + $0x48] sm:$0xff] %vm1878, %v1855
        %1889 = vst.msk [vmem:[#allocation3 + $0x50] sm:$0xff] %vm1878, %v1856
        %1890 = vst.msk [vmem:[#allocation3 + $0x58] sm:$0xff] %vm1878, %v1857
        %1891 = vst.msk [vmem:[#allocation3 + $0x60] sm:$0xff] %vm1878, %v1858
        %1892 = vst.msk [vmem:[#allocation3 + $0x68] sm:$0xff] %vm1878, %v1859
        %1893 = vst.msk [vmem:[#allocation3 + $0x70] sm:$0xff] %vm1878, %v1860
        %1894 = vst.msk [vmem:[#allocation3 + $0x78] sm:$0xff] %vm1878, %v1861
        %1895 = vst.msk [vmem:[#allocation4] sm:$0xff] %vm1878, %v1862
        %1896 = vst.msk [vmem:[#allocation4 + $0x8] sm:$0xff] %vm1878, %v1863
        %1897 = vst.msk [vmem:[#allocation4 + $0x10] sm:$0xff] %vm1878, %v1864
        %1898 = vst.msk [vmem:[#allocation4 + $0x18] sm:$0xff] %vm1878, %v1865
        %1899 = vst.msk [vmem:[#allocation4 + $0x20] sm:$0xff] %vm1878, %v1866
        %1900 = vst.msk [vmem:[#allocation4 + $0x28] sm:$0xff] %vm1878, %v1867
        %1901 = vst.msk [vmem:[#allocation4 + $0x30] sm:$0xff] %vm1878, %v1868
        %1902 = vst.msk [vmem:[#allocation4 + $0x38] sm:$0xff] %vm1878, %v1869
        %1903 = vst.msk [vmem:[#allocation4 + $0x40] sm:$0xff] %vm1878, %v1870
        %1904 = vst.msk [vmem:[#allocation4 + $0x48] sm:$0xff] %vm1878, %v1871
        %1905 = vst.msk [vmem:[#allocation4 + $0x50] sm:$0xff] %vm1878, %v1872
        %1906 = vst.msk [vmem:[#allocation4 + $0x58] sm:$0xff] %vm1878, %v1873
        %1907 = vst.msk [vmem:[#allocation4 + $0x60] sm:$0xff] %vm1878, %v1874
        %1908 = vst.msk [vmem:[#allocation4 + $0x68] sm:$0xff] %vm1878, %v1875
        %1909 = vst.msk [vmem:[#allocation4 + $0x70] sm:$0xff] %vm1878, %v1876
        %1910 = vst.msk [vmem:[#allocation4 + $0x78] sm:$0xff] %vm1878, %v1877
        %p1911 = scmp.eq.s32.totalorder %s21, 1
        // Predicated region
        $region83: #{vq_tower_forward.1} parent=73 // pred_check
          %p1912 = pneg %p1911
        $region84: #{vq_tower_forward.1} parent=73 // pred_check_branch
          %1914 = sbr.rel (%p1912) target = $region86
        $region85: #{vq_tower_forward.1} parent=73 // pred_region
          %v1915 = vld [vmem:[#allocation4] sm:$0xff]
          %v1916 = vld [vmem:[#allocation4 + $0x8] sm:$0xff]
          %v1917 = vld [vmem:[#allocation4 + $0x10] sm:$0xff]
          %v1918 = vld [vmem:[#allocation4 + $0x18] sm:$0xff]
          %v1919 = vld [vmem:[#allocation4 + $0x20] sm:$0xff]
          %v1920 = vld [vmem:[#allocation4 + $0x28] sm:$0xff]
          %v1921 = vld [vmem:[#allocation4 + $0x30] sm:$0xff]
          %v1922 = vld [vmem:[#allocation4 + $0x38] sm:$0xff]
          %v1923 = vld [vmem:[#allocation4 + $0x40] sm:$0xff]
          %v1924 = vld [vmem:[#allocation4 + $0x48] sm:$0xff]
          %v1925 = vld [vmem:[#allocation4 + $0x50] sm:$0xff]
          %v1926 = vld [vmem:[#allocation4 + $0x58] sm:$0xff]
          %v1927 = vld [vmem:[#allocation4 + $0x60] sm:$0xff]
          %v1928 = vld [vmem:[#allocation4 + $0x68] sm:$0xff]
          %v1929 = vld [vmem:[#allocation4 + $0x70] sm:$0xff]
          %v1930 = vld [vmem:[#allocation4 + $0x78] sm:$0xff]
          %1931 = vst.msk [vmem:[%s377] sm:$0xff] %vm1878, %v1915
          %1932 = vst.msk [vmem:[%s377 + $0x8] sm:$0xff] %vm1878, %v1916
          %1933 = vst.msk [vmem:[%s377 + $0x10] sm:$0xff] %vm1878, %v1917
          %1934 = vst.msk [vmem:[%s377 + $0x18] sm:$0xff] %vm1878, %v1918
          %1935 = vst.msk [vmem:[%s377 + $0x20] sm:$0xff] %vm1878, %v1919
          %1936 = vst.msk [vmem:[%s377 + $0x28] sm:$0xff] %vm1878, %v1920
          %1937 = vst.msk [vmem:[%s377 + $0x30] sm:$0xff] %vm1878, %v1921
          %1938 = vst.msk [vmem:[%s377 + $0x38] sm:$0xff] %vm1878, %v1922
          %1939 = vst.msk [vmem:[%s377 + $0x40] sm:$0xff] %vm1878, %v1923
          %1940 = vst.msk [vmem:[%s377 + $0x48] sm:$0xff] %vm1878, %v1924
          %1941 = vst.msk [vmem:[%s377 + $0x50] sm:$0xff] %vm1878, %v1925
          %1942 = vst.msk [vmem:[%s377 + $0x58] sm:$0xff] %vm1878, %v1926
          %1943 = vst.msk [vmem:[%s377 + $0x60] sm:$0xff] %vm1878, %v1927
          %1944 = vst.msk [vmem:[%s377 + $0x68] sm:$0xff] %vm1878, %v1928
          %1945 = vst.msk [vmem:[%s377 + $0x70] sm:$0xff] %vm1878, %v1929
          %1946 = vst.msk [vmem:[%s377 + $0x78] sm:$0xff] %vm1878, %v1930
        $region86: #{vq_tower_forward.1} parent=73 // pred_fallthru
          _
        %s1947 = smul.u32 16, %s20
        %p1948 = scmp.lt.s32.totalorder %s1947, 63
        %s1949 = scalar_select %p1948, %s1947, 63
        %s1950 = smul.addr %s1949, 8
        %s1951 = scalar_lea.vmem %s5, %s1950
        // Predicated region
        $region87: #{vq_tower_forward.1} parent=73 // pred_check
          %p1952 = pneg %p166
        $region88: #{vq_tower_forward.1} parent=73 // pred_check_branch
          %1954 = sbr.rel (%p1952) target = $region90
        $region89: #{vq_tower_forward.1} parent=73 // pred_region
          %s1955 = smul.u32 16, %s20
        $region90: #{vq_tower_forward.1} parent=73 // pred_fallthru
          _
      $region74: #{vq_tower_forward.1} parent=5 // pred_fallthru
        _
      %p1956 = scmp.le.s32.totalorder 2, %s11
      // Predicated region
      $region91: #{vq_tower_forward.1} parent=5 // pred_check
        %p1957 = pneg %p1956
      $region92: #{vq_tower_forward.1} parent=5 // pred_check_branch
        %1959 = sbr.rel (%p1957) target = $region94
      $region93: #{vq_tower_forward.1} parent=5 // pred_region
        %s1960 = ssub.s32 %s11, 2
        // Predicated region
        $region95: #{vq_tower_forward.1} parent=93 // pred_check
          %p1961 = pneg %p172
        $region96: #{vq_tower_forward.1} parent=93 // pred_check_branch
          %1963 = sbr.rel (%p1961) target = $region98
        $region97: #{vq_tower_forward.1} parent=93 // pred_region
          %s1964 = smul.u32 16, %s22
          %p1965 = scmp.lt.s32.totalorder %s1964, 63
          %s1966 = scalar_select %p1965, %s1964, 63
          %s1967 = smul.addr %s1966, 8
          %s1968 = scalar_lea.vmem %s5, %s1967
        $region98: #{vq_tower_forward.1} parent=93 // pred_fallthru
          _
      $region94: #{vq_tower_forward.1} parent=5 // pred_fallthru
        _
    $region6: #{vq_tower_forward.1} parent=1 // loop_footer
      %s15 = sadd.s32 1, %s11
    $region7: #{vq_tower_forward.1} parent=1 // loop_footer_branch
      %10 = sbr.rel target = $region3
    $region8: #{vq_tower_forward.1} parent=1 // loop_exit
      _

// kernel: squeeze.3
$region0: #{squeeze.3}
  %s0 = inlined_call_operand.vmem [shape: s32[512], index: 0, kind: input, shape index: {}]
  %s1 = inlined_call_operand.hbm [shape: s32[2,256], index: 1, kind: output, shape index: {}]
  $region1: #{squeeze.3} parent=0
    #allocation0 [shape = 'u8[2048]{0}', space=vmem, size = 0x800, scoped, tag = 'operand span for operand 1']
    #allocation1 [shape = 's32[1]{0}', space=sflag, size = 0x4, scoped, tag = 'scoped memory for squeeze.3']
    #allocation2 [shape = 'u8[8192]{0}', space=vmem, size = 0x2000, scoped, tag = 'scoped mem for output reshape']
    #allocation3 [shape = 'u8[4096]{0}', space=vmem, size = 0x1000, scoped, tag = 'scoped mem for input reshape']
    %2 = vsyncpa [#allocation1], 0
    %s4 = ssub.s32 16, 1
    %v5 = vld [vmem:[%s0] sm:%s4]
    %6 = vst [vmem:[#allocation3] sm:%s4] %v5
    %v7 = vld [vmem:[#allocation3] sm:$0xf]
    %8 = vst [vmem:[#allocation2] ss:$8 sm:$0x3] %v7
    %s9 = scalar_lea.vmem [#allocation2], 4294967281
    %10 = vst [vmem:[%s9] ss:$8 sm:$0xc] %v7
    %s12 = ssub.s32 4, 1
    %v13 = vld [vmem:[#allocation2] sm:%s12]
    %s15 = ssub.s32 4, 1
    %16 = vst [vmem:[#allocation0] sm:%s15] %v13
    %s17 = scalar_lea.vmem [#allocation2], 8
    %v18 = vld [vmem:[%s17] sm:%s12]
    %s20 = ssub.s32 4, 1
    %s21 = scalar_lea.vmem [#allocation0], 2
    %22 = vst [vmem:[%s21] sm:%s20] %v18
    %24 = vsyncadd [#allocation1], 0
    %s26 = sshll.u32 [#allocation0], 4
    %s27 = int_to_ptr.vmem [resolvable:$true] %s26
    %s28 = sshll.u32 %s1, 4
    %s29 = int_to_ptr.hbm [resolvable:$true] %s28
    %31 = dma.vmem_to_hbm [thread:$0]  %s27, 64, %s29, [#allocation1]
    %33 = dma.done [#allocation1], 64
    %34 = vsyncpa [#allocation1], 1

</llo_original>
